<compile_context>
chip_gen: v5e
topology: v5e:2x2
jax: 0.10.0
libtpu: 0.0.40
codegen_flags: <defaults>
</compile_context>

<pallas_src>
import jax
import jax.numpy as jnp
from jax.experimental import pallas as pl

# ---------------- small BERT-like config ----------------
VOCAB = 100      # vocab size
B = 2            # batch
S = 8            # sequence length
H = 32           # hidden size
NH = 2           # attention heads
DH = H // NH     # head dim
FF = 64          # intermediate (FFN) size
NLAYERS = 2      # encoder layers
MAX_POS = 16     # max position embeddings
LN_EPS = 1e-12   # BERT LayerNorm eps

BS = B * S       # token rows in the lane-packed activation slab
H3 = 3 * H       # packed QKV lane width (also the packed-vector slab width)
VROWS = 2 + 8 * NLAYERS   # rows in the packed bias/LN slab


# ---------------- shared math helpers (used in-kernel and by the reference) ----
def _layer_norm(x, gamma, beta, eps=LN_EPS):
    mean = jnp.mean(x, axis=-1, keepdims=True)
    var = jnp.mean((x - mean) ** 2, axis=-1, keepdims=True)
    return (x - mean) * jax.lax.rsqrt(var + eps) * gamma + beta


def _gelu(x):
    # TODO(synk): HF BERT default is exact erf-GELU; tanh approximation used here.
    return jax.nn.gelu(x, approximate=True)


# ---------------- fused Pallas kernel: embeddings-LN + all encoder layers -----
def fused_encoder_kernel(emb_ref, mask_ref, wcat_ref, w1_ref, w2_ref, vecs_ref,
                         out_ref):
    # emb_ref : (B*S, H)        lane-packed token embeddings (word + pos + type)
    # mask_ref: (B, 1, S)       additive attention mask (0 keep / -1e9 drop)
    # wcat    : (L, H, 4H)      lanes [0:3H]=Wq|Wk|Wv (head-major), [3H:4H]=Wo
    # w1/w2   : (L, H, FF) / (L, FF, H)
    # vecs    : (2+8L, 3H)      row 0/1: emb LN gamma/beta; per layer 8 rows:
    #                           [bqkv, bo, ln1_g, ln1_b, b1, b2, ln2_g, ln2_b]
    # out     : (B, H)          CLS vectors
    x = _layer_norm(emb_ref[...], vecs_ref[0:1, 0:H], vecs_ref[1:2, 0:H])   # (BS, H)
    mask = mask_ref[...]                                                    # (B, 1, S)
    scale = 1.0 / (DH ** 0.5)

    for li in range(NLAYERS):    # static unroll; every weight already resident in VMEM
        w = wcat_ref[li]                                   # (H, 4H) lane-dense slab
        base = 2 + li * 8
        bqkv = vecs_ref[base + 0:base + 1, 0:H3]
        bo   = vecs_ref[base + 1:base + 2, 0:H]
        ln1g = vecs_ref[base + 2:base + 3, 0:H]
        ln1b = vecs_ref[base + 3:base + 4, 0:H]
        b1   = vecs_ref[base + 4:base + 5, 0:FF]
        b2   = vecs_ref[base + 5:base + 6, 0:H]
        ln2g = vecs_ref[base + 6:base + 7, 0:H]
        ln2b = vecs_ref[base + 7:base + 8, 0:H]

        # ---- fused QKV projection: ONE 2-D matmul, 96-lane-wide output ----
        qkv = jnp.dot(x, w[:, 0:H3],
                      preferred_element_type=jnp.float32) + bqkv            # (BS, 3H)

        # ---- per-head attention (NH static); ctx stays head-lane-packed ----
        ctx_parts = []
        for h in range(NH):
            qh = qkv[:, h * DH:(h + 1) * DH].reshape(B, S, DH)
            kh = qkv[:, H + h * DH:H + (h + 1) * DH].reshape(B, S, DH)
            vh = qkv[:, 2 * H + h * DH:2 * H + (h + 1) * DH].reshape(B, S, DH)
            s = jnp.einsum('bqd,bkd->bqk', qh, kh,
                           preferred_element_type=jnp.float32) * scale + mask  # (B,S,S)
            s = s - jnp.max(s, axis=-1, keepdims=True)
            p = jnp.exp(s)
            p = p * pl.reciprocal(jnp.sum(p, axis=-1, keepdims=True), approx=True)
            ch = jnp.einsum('bqk,bkd->bqd', p, vh,
                            preferred_element_type=jnp.float32)             # (B, S, DH)
            ctx_parts.append(ch.reshape(BS, DH))
        ctx = jnp.concatenate(ctx_parts, axis=-1)                           # (BS, H)

        # ---- output projection (ONE 2-D matmul), residual + LN ----
        attn = jnp.dot(ctx, w[:, H3:4 * H],
                       preferred_element_type=jnp.float32) + bo
        x1 = _layer_norm(x + attn, ln1g, ln1b)

        # ---- feed-forward, residual + LN ----
        ff = _gelu(jnp.dot(x1, w1_ref[li],
                           preferred_element_type=jnp.float32) + b1)
        ff = jnp.dot(ff, w2_ref[li], preferred_element_type=jnp.float32) + b2
        y = x1 + ff

        if li < NLAYERS - 1:
            x = _layer_norm(y, ln2g, ln2b)
        else:
            # last layer: only the B CLS rows (row b*S) need the final LayerNorm
            cls = jnp.concatenate([y[b * S:b * S + 1, :] for b in range(B)], axis=0)
            out_ref[...] = _layer_norm(cls, ln2g, ln2b)                     # (B, H)


# ---------------- host-side packing (glue, runs as tiny XLA ops) --------------
def _pack_inputs(params, input_ids, attention_mask):
    word = jnp.take(params["word_emb"], input_ids, axis=0)          # (B, S, H)
    pos = params["pos_emb"][:S][None]                                # (1, S, H)
    tok = params["type_emb"][0][None, None]                          # (1, 1, H)
    emb = (word + pos + tok).reshape(BS, H).astype(jnp.float32)      # lane-packed slab

    # BERT-style extended additive mask: 0 keep / -1e9 drop
    mask = ((1.0 - attention_mask.astype(jnp.float32)) * -1e9)[:, None, :]   # (B, 1, S)

    # one lane-dense (L, H, 4H) weight slab: [Wq | Wk | Wv | Wo]
    wcat = jnp.concatenate([params["wq"], params["wk"], params["wv"],
                            params["wo"]], axis=-1)                  # (L, H, 4H)

    def row(v):                                                      # 1-D -> (1, 3H)
        return jnp.pad(v, (0, H3 - v.shape[0]))[None, :]

    rows = [row(params["emb_ln_g"]), row(params["emb_ln_b"])]
    for li in range(NLAYERS):
        bqkv = jnp.concatenate([params["bq"][li], params["bk"][li], params["bv"][li]])
        rows += [row(bqkv), row(params["bo"][li]),
                 row(params["ln1_g"][li]), row(params["ln1_b"][li]),
                 row(params["b1"][li]), row(params["b2"][li]),
                 row(params["ln2_g"][li]), row(params["ln2_b"][li])]
    vecs = jnp.concatenate(rows, axis=0)                             # (2+8L, 3H)

    return emb, mask, wcat, params["w1"], params["w2"], vecs


# ---------------- pallas_call plumbing ----------------
def _full(shape):
    nd = len(shape)
    return pl.BlockSpec(shape, lambda i: (0,) * nd)


def transformer_forward(params, input_ids, attention_mask):
    args = list(_pack_inputs(params, input_ids, attention_mask))    # 6 inputs
    cls = pl.pallas_call(
        fused_encoder_kernel,
        out_shape=jax.ShapeDtypeStruct((B, H), jnp.float32),
        grid=(1,),
        in_specs=[_full(a.shape) for a in args],
        out_specs=_full((B, H)),
    )(*args)
    return cls                                                       # (B, H)


# ---------------- pure-JAX reference (standard MHA math, unpacked weights) ----
def reference_forward(params, input_ids, attention_mask):
    word = jnp.take(params["word_emb"], input_ids, axis=0)
    x = word + params["pos_emb"][:S][None] + params["type_emb"][0][None, None]
    x = _layer_norm(x, params["emb_ln_g"], params["emb_ln_b"])       # (B, S, H)
    mask = (1.0 - attention_mask.astype(jnp.float32)) * -1e9         # (B, S)
    scale = 1.0 / (DH ** 0.5)
    for li in range(NLAYERS):
        q = x @ params["wq"][li] + params["bq"][li]
        k = x @ params["wk"][li] + params["bk"][li]
        v = x @ params["wv"][li] + params["bv"][li]
        q = q.reshape(B, S, NH, DH).transpose(0, 2, 1, 3)
        k = k.reshape(B, S, NH, DH).transpose(0, 2, 1, 3)
        v = v.reshape(B, S, NH, DH).transpose(0, 2, 1, 3)
        s = jnp.einsum('bhqd,bhkd->bhqk', q, k) * scale + mask[:, None, None, :]
        p = jax.nn.softmax(s, axis=-1)
        ctx = jnp.einsum('bhqk,bhkd->bhqd', p, v)
        ctx = ctx.transpose(0, 2, 1, 3).reshape(B, S, H)
        attn = ctx @ params["wo"][li] + params["bo"][li]
        x1 = _layer_norm(x + attn, params["ln1_g"][li], params["ln1_b"][li])
        ff = _gelu(x1 @ params["w1"][li] + params["b1"][li])
        ff = ff @ params["w2"][li] + params["b2"][li]
        x = _layer_norm(x1 + ff, params["ln2_g"][li], params["ln2_b"][li])
    return x[:, 0, :]


# ---------------- parameter init (deterministic, synthetic) -------------------
def init_params(key):
    ks = list(jax.random.split(key, 21))

    def nrm(shape, scale=0.02):
        return scale * jax.random.normal(ks.pop(), shape, dtype=jnp.float32)

    return {
        "word_emb": nrm((VOCAB, H)),
        "pos_emb":  nrm((MAX_POS, H)),
        "type_emb": nrm((2, H)),
        "emb_ln_g": 1.0 + nrm((H,)),
        "emb_ln_b": nrm((H,)),
        "wq": nrm((NLAYERS, H, H)), "bq": nrm((NLAYERS, H)),
        "wk": nrm((NLAYERS, H, H)), "bk": nrm((NLAYERS, H)),
        "wv": nrm((NLAYERS, H, H)), "bv": nrm((NLAYERS, H)),
        "wo": nrm((NLAYERS, H, H)), "bo": nrm((NLAYERS, H)),
        "ln1_g": 1.0 + nrm((NLAYERS, H)), "ln1_b": nrm((NLAYERS, H)),
        "w1": nrm((NLAYERS, H, FF)), "b1": nrm((NLAYERS, FF)),
        "w2": nrm((NLAYERS, FF, H)), "b2": nrm((NLAYERS, H)),
        "ln2_g": 1.0 + nrm((NLAYERS, H)), "ln2_b": nrm((NLAYERS, H)),
    }


if __name__ == "__main__":
    key = jax.random.PRNGKey(0)
    pkey, ikey = jax.random.split(key)

    params = init_params(pkey)
    input_ids = jax.random.randint(ikey, (B, S), 0, VOCAB, dtype=jnp.int32)
    attention_mask = jnp.ones((B, S), dtype=jnp.int32)
    attention_mask = attention_mask.at[1, S - 1].set(0)   # exercise the padding mask

    fwd = jax.jit(transformer_forward)
    out = jax.block_until_ready(fwd(params, input_ids, attention_mask))
    assert out.shape == (B, H) and out.dtype == jnp.float32

    ref = reference_forward(params, input_ids, attention_mask)
    assert jnp.allclose(out, ref, atol=5e-2, rtol=5e-2), "mismatch vs pure-JAX reference"

    print("KERNEL_OK")
</pallas_src>

<mosaic_0001>
module attributes {stable_mosaic.version = 11 : i64} {
  func.func @fused_encoder_kernel(%arg0: i32, %arg1: memref<16x32xf32, #tpu.memory_space<vmem>>, %arg2: memref<2x1x8xf32, #tpu.memory_space<vmem>>, %arg3: memref<2x32x128xf32, #tpu.memory_space<vmem>>, %arg4: memref<2x32x64xf32, #tpu.memory_space<vmem>>, %arg5: memref<2x64x32xf32, #tpu.memory_space<vmem>>, %arg6: memref<18x96xf32, #tpu.memory_space<vmem>>, %arg7: memref<2x32xf32, #tpu.memory_space<vmem>>) attributes {dimension_semantics = [#tpu.dimension_semantics<arbitrary>], iteration_bounds = array<i64: 1>, scalar_prefetch = 0 : i64, scratch_operands = 0 : i64, tpu.core_type = #tpu.core_type<tc>, window_params = [{pipeline_mode = #tpu.pipeline_mode<synchronous>, transform_indices = @transform_0, window_bounds = array<i64: 16, 32>}, {pipeline_mode = #tpu.pipeline_mode<synchronous>, transform_indices = @transform_1, window_bounds = array<i64: 2, 1, 8>}, {pipeline_mode = #tpu.pipeline_mode<synchronous>, transform_indices = @transform_2, window_bounds = array<i64: 2, 32, 128>}, {pipeline_mode = #tpu.pipeline_mode<synchronous>, transform_indices = @transform_3, window_bounds = array<i64: 2, 32, 64>}, {pipeline_mode = #tpu.pipeline_mode<synchronous>, transform_indices = @transform_4, window_bounds = array<i64: 2, 64, 32>}, {pipeline_mode = #tpu.pipeline_mode<synchronous>, transform_indices = @transform_5, window_bounds = array<i64: 18, 96>}, {pipeline_mode = #tpu.pipeline_mode<synchronous>, transform_indices = @transform_6, window_bounds = array<i64: 2, 32>}]} {
    %c0 = arith.constant 0 : index
    %c0_0 = arith.constant 0 : index
    %0 = vector.load %arg1[%c0, %c0_0] : memref<16x32xf32, #tpu.memory_space<vmem>>, vector<16x32xf32>
    %c0_1 = arith.constant 0 : index
    %c0_2 = arith.constant 0 : index
    %1 = vector.load %arg6[%c0_1, %c0_2] : memref<18x96xf32, #tpu.memory_space<vmem>>, vector<1x32xf32>
    %c1 = arith.constant 1 : index
    %c0_3 = arith.constant 0 : index
    %2 = vector.load %arg6[%c1, %c0_3] : memref<18x96xf32, #tpu.memory_space<vmem>>, vector<1x32xf32>
    %cst = arith.constant dense<0.000000e+00> : vector<16xf32>
    %3 = vector.multi_reduction <add>, %0, %cst [1] : vector<16x32xf32> to vector<16xf32>
    %4 = vector.shape_cast %3 : vector<16xf32> to vector<16x1xf32>
    %cst_4 = arith.constant 3.200000e+01 : f32
    %5 = vector.broadcast %cst_4 : f32 to vector<16x1xf32>
    %6 = arith.divf %4, %5 : vector<16x1xf32>
    %7 = vector.broadcast %6 : vector<16x1xf32> to vector<16x32xf32>
    %8 = arith.subf %0, %7 : vector<16x32xf32>
    %9 = arith.mulf %8, %8 : vector<16x32xf32>
    %cst_5 = arith.constant dense<0.000000e+00> : vector<16xf32>
    %10 = vector.multi_reduction <add>, %9, %cst_5 [1] : vector<16x32xf32> to vector<16xf32>
    %11 = vector.shape_cast %10 : vector<16xf32> to vector<16x1xf32>
    %cst_6 = arith.constant 3.200000e+01 : f32
    %12 = vector.broadcast %cst_6 : f32 to vector<16x1xf32>
    %13 = arith.divf %11, %12 : vector<16x1xf32>
    %14 = vector.broadcast %6 : vector<16x1xf32> to vector<16x32xf32>
    %15 = arith.subf %0, %14 : vector<16x32xf32>
    %cst_7 = arith.constant 9.99999996E-13 : f32
    %16 = vector.broadcast %cst_7 : f32 to vector<16x1xf32>
    %17 = arith.addf %13, %16 : vector<16x1xf32>
    %18 = math.rsqrt %17 : vector<16x1xf32>
    %19 = vector.broadcast %18 : vector<16x1xf32> to vector<16x32xf32>
    %20 = arith.mulf %15, %19 : vector<16x32xf32>
    %21 = vector.broadcast %1 : vector<1x32xf32> to vector<16x32xf32>
    %22 = arith.mulf %20, %21 : vector<16x32xf32>
    %23 = vector.broadcast %2 : vector<1x32xf32> to vector<16x32xf32>
    %24 = arith.addf %22, %23 : vector<16x32xf32>
    %c0_8 = arith.constant 0 : index
    %c0_9 = arith.constant 0 : index
    %c0_10 = arith.constant 0 : index
    %25 = vector.load %arg2[%c0_8, %c0_9, %c0_10] : memref<2x1x8xf32, #tpu.memory_space<vmem>>, vector<2x1x8xf32>
    %c0_11 = arith.constant 0 : index
    %c0_12 = arith.constant 0 : index
    %c0_13 = arith.constant 0 : index
    %26 = vector.load %arg3[%c0_11, %c0_12, %c0_13] : memref<2x32x128xf32, #tpu.memory_space<vmem>>, vector<1x32x128xf32>
    %27 = vector.shape_cast %26 : vector<1x32x128xf32> to vector<32x128xf32>
    %c2 = arith.constant 2 : index
    %c0_14 = arith.constant 0 : index
    %28 = vector.load %arg6[%c2, %c0_14] : memref<18x96xf32, #tpu.memory_space<vmem>>, vector<1x96xf32>
    %c3 = arith.constant 3 : index
    %c0_15 = arith.constant 0 : index
    %29 = vector.load %arg6[%c3, %c0_15] : memref<18x96xf32, #tpu.memory_space<vmem>>, vector<1x32xf32>
    %c4 = arith.constant 4 : index
    %c0_16 = arith.constant 0 : index
    %30 = vector.load %arg6[%c4, %c0_16] : memref<18x96xf32, #tpu.memory_space<vmem>>, vector<1x32xf32>
    %c5 = arith.constant 5 : index
    %c0_17 = arith.constant 0 : index
    %31 = vector.load %arg6[%c5, %c0_17] : memref<18x96xf32, #tpu.memory_space<vmem>>, vector<1x32xf32>
    %c6 = arith.constant 6 : index
    %c0_18 = arith.constant 0 : index
    %32 = vector.load %arg6[%c6, %c0_18] : memref<18x96xf32, #tpu.memory_space<vmem>>, vector<1x64xf32>
    %c7 = arith.constant 7 : index
    %c0_19 = arith.constant 0 : index
    %33 = vector.load %arg6[%c7, %c0_19] : memref<18x96xf32, #tpu.memory_space<vmem>>, vector<1x32xf32>
    %c8 = arith.constant 8 : index
    %c0_20 = arith.constant 0 : index
    %34 = vector.load %arg6[%c8, %c0_20] : memref<18x96xf32, #tpu.memory_space<vmem>>, vector<1x32xf32>
    %c9 = arith.constant 9 : index
    %c0_21 = arith.constant 0 : index
    %35 = vector.load %arg6[%c9, %c0_21] : memref<18x96xf32, #tpu.memory_space<vmem>>, vector<1x32xf32>
    %36 = vector.extract_strided_slice %27 {offsets = [0, 0], sizes = [32, 96], strides = [1, 1]} : vector<32x128xf32> to vector<32x96xf32>
    %cst_22 = arith.constant dense<0.000000e+00> : vector<16x96xf32>
    %37 = tpu.matmul %24, %36, %cst_22 {dimension_numbers = #tpu.dot_dimension_numbers<[1], [0], [0], [1], [0, 0, 1, 1], [], []>} : vector<16x32xf32>, vector<32x96xf32>, vector<16x96xf32> -> vector<16x96xf32>
    %38 = vector.broadcast %28 : vector<1x96xf32> to vector<16x96xf32>
    %39 = arith.addf %37, %38 : vector<16x96xf32>
    %40 = vector.extract_strided_slice %39 {offsets = [0, 0], sizes = [16, 16], strides = [1, 1]} : vector<16x96xf32> to vector<16x16xf32>
    %41 = vector.shape_cast %40 : vector<16x16xf32> to vector<2x8x16xf32>
    %42 = vector.extract_strided_slice %39 {offsets = [0, 32], sizes = [16, 16], strides = [1, 1]} : vector<16x96xf32> to vector<16x16xf32>
    %43 = vector.shape_cast %42 : vector<16x16xf32> to vector<2x8x16xf32>
    %44 = vector.extract_strided_slice %39 {offsets = [0, 64], sizes = [16, 16], strides = [1, 1]} : vector<16x96xf32> to vector<16x16xf32>
    %45 = vector.shape_cast %44 : vector<16x16xf32> to vector<2x8x16xf32>
    "tpu.trace_start"() <{level = 10 : i32, message = "bqd,bkd->bqk"}> : () -> ()
    %cst_23 = arith.constant dense<0.000000e+00> : vector<2x8x8xf32>
    %46 = tpu.matmul %41, %43, %cst_23 {dimension_numbers = #tpu.dot_dimension_numbers<[2], [2], [1], [1], [0, 0, 0, 1, 1, 1], [0], [0]>} : vector<2x8x16xf32>, vector<2x8x16xf32>, vector<2x8x8xf32> -> vector<2x8x8xf32>
    "tpu.trace_stop"() : () -> ()
    %cst_24 = arith.constant 2.500000e-01 : f32
    %47 = vector.broadcast %cst_24 : f32 to vector<2x8x8xf32>
    %48 = arith.mulf %46, %47 : vector<2x8x8xf32>
    %49 = vector.broadcast %25 : vector<2x1x8xf32> to vector<2x8x8xf32>
    %50 = arith.addf %48, %49 : vector<2x8x8xf32>
    %cst_25 = arith.constant dense<0xFF800000> : vector<2x8xf32>
    %51 = vector.multi_reduction <maximumf>, %50, %cst_25 [2] : vector<2x8x8xf32> to vector<2x8xf32>
    %52 = vector.shape_cast %51 : vector<2x8xf32> to vector<2x8x1xf32>
    %53 = vector.broadcast %52 : vector<2x8x1xf32> to vector<2x8x8xf32>
    %54 = arith.subf %50, %53 : vector<2x8x8xf32>
    %55 = math.exp %54 : vector<2x8x8xf32>
    %cst_26 = arith.constant dense<0.000000e+00> : vector<2x8xf32>
    %56 = vector.multi_reduction <add>, %55, %cst_26 [2] : vector<2x8x8xf32> to vector<2x8xf32>
    %57 = vector.shape_cast %56 : vector<2x8xf32> to vector<2x8x1xf32>
    %58 = tpu.reciprocal %57 {approx = true} : vector<2x8x1xf32> -> vector<2x8x1xf32>
    %59 = vector.broadcast %58 : vector<2x8x1xf32> to vector<2x8x8xf32>
    %60 = arith.mulf %55, %59 : vector<2x8x8xf32>
    "tpu.trace_start"() <{level = 10 : i32, message = "bqk,bkd->bqd"}> : () -> ()
    %cst_27 = arith.constant dense<0.000000e+00> : vector<2x8x16xf32>
    %61 = tpu.matmul %60, %45, %cst_27 {dimension_numbers = #tpu.dot_dimension_numbers<[2], [1], [1], [2], [0, 0, 0, 1, 1, 2], [0], [0]>} : vector<2x8x8xf32>, vector<2x8x16xf32>, vector<2x8x16xf32> -> vector<2x8x16xf32>
    "tpu.trace_stop"() : () -> ()
    %62 = vector.shape_cast %61 : vector<2x8x16xf32> to vector<16x16xf32>
    %63 = vector.extract_strided_slice %39 {offsets = [0, 16], sizes = [16, 16], strides = [1, 1]} : vector<16x96xf32> to vector<16x16xf32>
    %64 = vector.shape_cast %63 : vector<16x16xf32> to vector<2x8x16xf32>
    %65 = vector.extract_strided_slice %39 {offsets = [0, 48], sizes = [16, 16], strides = [1, 1]} : vector<16x96xf32> to vector<16x16xf32>
    %66 = vector.shape_cast %65 : vector<16x16xf32> to vector<2x8x16xf32>
    %67 = vector.extract_strided_slice %39 {offsets = [0, 80], sizes = [16, 16], strides = [1, 1]} : vector<16x96xf32> to vector<16x16xf32>
    %68 = vector.shape_cast %67 : vector<16x16xf32> to vector<2x8x16xf32>
    "tpu.trace_start"() <{level = 10 : i32, message = "bqd,bkd->bqk"}> : () -> ()
    %cst_28 = arith.constant dense<0.000000e+00> : vector<2x8x8xf32>
    %69 = tpu.matmul %64, %66, %cst_28 {dimension_numbers = #tpu.dot_dimension_numbers<[2], [2], [1], [1], [0, 0, 0, 1, 1, 1], [0], [0]>} : vector<2x8x16xf32>, vector<2x8x16xf32>, vector<2x8x8xf32> -> vector<2x8x8xf32>
    "tpu.trace_stop"() : () -> ()
    %cst_29 = arith.constant 2.500000e-01 : f32
    %70 = vector.broadcast %cst_29 : f32 to vector<2x8x8xf32>
    %71 = arith.mulf %69, %70 : vector<2x8x8xf32>
    %72 = vector.broadcast %25 : vector<2x1x8xf32> to vector<2x8x8xf32>
    %73 = arith.addf %71, %72 : vector<2x8x8xf32>
    %cst_30 = arith.constant dense<0xFF800000> : vector<2x8xf32>
    %74 = vector.multi_reduction <maximumf>, %73, %cst_30 [2] : vector<2x8x8xf32> to vector<2x8xf32>
    %75 = vector.shape_cast %74 : vector<2x8xf32> to vector<2x8x1xf32>
    %76 = vector.broadcast %75 : vector<2x8x1xf32> to vector<2x8x8xf32>
    %77 = arith.subf %73, %76 : vector<2x8x8xf32>
    %78 = math.exp %77 : vector<2x8x8xf32>
    %cst_31 = arith.constant dense<0.000000e+00> : vector<2x8xf32>
    %79 = vector.multi_reduction <add>, %78, %cst_31 [2] : vector<2x8x8xf32> to vector<2x8xf32>
    %80 = vector.shape_cast %79 : vector<2x8xf32> to vector<2x8x1xf32>
    %81 = tpu.reciprocal %80 {approx = true} : vector<2x8x1xf32> -> vector<2x8x1xf32>
    %82 = vector.broadcast %81 : vector<2x8x1xf32> to vector<2x8x8xf32>
    %83 = arith.mulf %78, %82 : vector<2x8x8xf32>
    "tpu.trace_start"() <{level = 10 : i32, message = "bqk,bkd->bqd"}> : () -> ()
    %cst_32 = arith.constant dense<0.000000e+00> : vector<2x8x16xf32>
    %84 = tpu.matmul %83, %68, %cst_32 {dimension_numbers = #tpu.dot_dimension_numbers<[2], [1], [1], [2], [0, 0, 0, 1, 1, 2], [0], [0]>} : vector<2x8x8xf32>, vector<2x8x16xf32>, vector<2x8x16xf32> -> vector<2x8x16xf32>
    "tpu.trace_stop"() : () -> ()
    %85 = vector.shape_cast %84 : vector<2x8x16xf32> to vector<16x16xf32>
    %86 = tpu.concatenate %62, %85 in 1 : vector<16x16xf32>, vector<16x16xf32> -> vector<16x32xf32>
    %87 = vector.extract_strided_slice %27 {offsets = [0, 96], sizes = [32, 32], strides = [1, 1]} : vector<32x128xf32> to vector<32x32xf32>
    %cst_33 = arith.constant dense<0.000000e+00> : vector<16x32xf32>
    %88 = tpu.matmul %86, %87, %cst_33 {dimension_numbers = #tpu.dot_dimension_numbers<[1], [0], [0], [1], [0, 0, 1, 1], [], []>} : vector<16x32xf32>, vector<32x32xf32>, vector<16x32xf32> -> vector<16x32xf32>
    %89 = vector.broadcast %29 : vector<1x32xf32> to vector<16x32xf32>
    %90 = arith.addf %88, %89 : vector<16x32xf32>
    %91 = arith.addf %24, %90 : vector<16x32xf32>
    %cst_34 = arith.constant dense<0.000000e+00> : vector<16xf32>
    %92 = vector.multi_reduction <add>, %91, %cst_34 [1] : vector<16x32xf32> to vector<16xf32>
    %93 = vector.shape_cast %92 : vector<16xf32> to vector<16x1xf32>
    %cst_35 = arith.constant 3.200000e+01 : f32
    %94 = vector.broadcast %cst_35 : f32 to vector<16x1xf32>
    %95 = arith.divf %93, %94 : vector<16x1xf32>
    %96 = vector.broadcast %95 : vector<16x1xf32> to vector<16x32xf32>
    %97 = arith.subf %91, %96 : vector<16x32xf32>
    %98 = arith.mulf %97, %97 : vector<16x32xf32>
    %cst_36 = arith.constant dense<0.000000e+00> : vector<16xf32>
    %99 = vector.multi_reduction <add>, %98, %cst_36 [1] : vector<16x32xf32> to vector<16xf32>
    %100 = vector.shape_cast %99 : vector<16xf32> to vector<16x1xf32>
    %cst_37 = arith.constant 3.200000e+01 : f32
    %101 = vector.broadcast %cst_37 : f32 to vector<16x1xf32>
    %102 = arith.divf %100, %101 : vector<16x1xf32>
    %103 = vector.broadcast %95 : vector<16x1xf32> to vector<16x32xf32>
    %104 = arith.subf %91, %103 : vector<16x32xf32>
    %cst_38 = arith.constant 9.99999996E-13 : f32
    %105 = vector.broadcast %cst_38 : f32 to vector<16x1xf32>
    %106 = arith.addf %102, %105 : vector<16x1xf32>
    %107 = math.rsqrt %106 : vector<16x1xf32>
    %108 = vector.broadcast %107 : vector<16x1xf32> to vector<16x32xf32>
    %109 = arith.mulf %104, %108 : vector<16x32xf32>
    %110 = vector.broadcast %30 : vector<1x32xf32> to vector<16x32xf32>
    %111 = arith.mulf %109, %110 : vector<16x32xf32>
    %112 = vector.broadcast %31 : vector<1x32xf32> to vector<16x32xf32>
    %113 = arith.addf %111, %112 : vector<16x32xf32>
    %c0_39 = arith.constant 0 : index
    %c0_40 = arith.constant 0 : index
    %c0_41 = arith.constant 0 : index
    %114 = vector.load %arg4[%c0_39, %c0_40, %c0_41] : memref<2x32x64xf32, #tpu.memory_space<vmem>>, vector<1x32x64xf32>
    %115 = vector.shape_cast %114 : vector<1x32x64xf32> to vector<32x64xf32>
    %cst_42 = arith.constant dense<0.000000e+00> : vector<16x64xf32>
    %116 = tpu.matmul %113, %115, %cst_42 {dimension_numbers = #tpu.dot_dimension_numbers<[1], [0], [0], [1], [0, 0, 1, 1], [], []>} : vector<16x32xf32>, vector<32x64xf32>, vector<16x64xf32> -> vector<16x64xf32>
    %117 = vector.broadcast %32 : vector<1x64xf32> to vector<16x64xf32>
    %118 = arith.addf %116, %117 : vector<16x64xf32>
    %119 = arith.mulf %118, %118 : vector<16x64xf32>
    %120 = arith.mulf %118, %119 : vector<16x64xf32>
    %cst_43 = arith.constant 4.471500e-02 : f32
    %121 = vector.broadcast %cst_43 : f32 to vector<16x64xf32>
    %122 = arith.mulf %121, %120 : vector<16x64xf32>
    %123 = arith.addf %118, %122 : vector<16x64xf32>
    %cst_44 = arith.constant 0.797884583 : f32
    %124 = vector.broadcast %cst_44 : f32 to vector<16x64xf32>
    %125 = arith.mulf %124, %123 : vector<16x64xf32>
    %126 = math.tanh %125 : vector<16x64xf32>
    %cst_45 = arith.constant 1.000000e+00 : f32
    %127 = vector.broadcast %cst_45 : f32 to vector<16x64xf32>
    %128 = arith.addf %127, %126 : vector<16x64xf32>
    %cst_46 = arith.constant 5.000000e-01 : f32
    %129 = vector.broadcast %cst_46 : f32 to vector<16x64xf32>
    %130 = arith.mulf %129, %128 : vector<16x64xf32>
    %131 = arith.mulf %118, %130 : vector<16x64xf32>
    %c0_47 = arith.constant 0 : index
    %c0_48 = arith.constant 0 : index
    %c0_49 = arith.constant 0 : index
    %132 = vector.load %arg5[%c0_47, %c0_48, %c0_49] : memref<2x64x32xf32, #tpu.memory_space<vmem>>, vector<1x64x32xf32>
    %133 = vector.shape_cast %132 : vector<1x64x32xf32> to vector<64x32xf32>
    %cst_50 = arith.constant dense<0.000000e+00> : vector<16x32xf32>
    %134 = tpu.matmul %131, %133, %cst_50 {dimension_numbers = #tpu.dot_dimension_numbers<[1], [0], [0], [1], [0, 0, 1, 1], [], []>} : vector<16x64xf32>, vector<64x32xf32>, vector<16x32xf32> -> vector<16x32xf32>
    %135 = vector.broadcast %33 : vector<1x32xf32> to vector<16x32xf32>
    %136 = arith.addf %134, %135 : vector<16x32xf32>
    %137 = arith.addf %113, %136 : vector<16x32xf32>
    %cst_51 = arith.constant dense<0.000000e+00> : vector<16xf32>
    %138 = vector.multi_reduction <add>, %137, %cst_51 [1] : vector<16x32xf32> to vector<16xf32>
    %139 = vector.shape_cast %138 : vector<16xf32> to vector<16x1xf32>
    %cst_52 = arith.constant 3.200000e+01 : f32
    %140 = vector.broadcast %cst_52 : f32 to vector<16x1xf32>
    %141 = arith.divf %139, %140 : vector<16x1xf32>
    %142 = vector.broadcast %141 : vector<16x1xf32> to vector<16x32xf32>
    %143 = arith.subf %137, %142 : vector<16x32xf32>
    %144 = arith.mulf %143, %143 : vector<16x32xf32>
    %cst_53 = arith.constant dense<0.000000e+00> : vector<16xf32>
    %145 = vector.multi_reduction <add>, %144, %cst_53 [1] : vector<16x32xf32> to vector<16xf32>
    %146 = vector.shape_cast %145 : vector<16xf32> to vector<16x1xf32>
    %cst_54 = arith.constant 3.200000e+01 : f32
    %147 = vector.broadcast %cst_54 : f32 to vector<16x1xf32>
    %148 = arith.divf %146, %147 : vector<16x1xf32>
    %149 = vector.broadcast %141 : vector<16x1xf32> to vector<16x32xf32>
    %150 = arith.subf %137, %149 : vector<16x32xf32>
    %cst_55 = arith.constant 9.99999996E-13 : f32
    %151 = vector.broadcast %cst_55 : f32 to vector<16x1xf32>
    %152 = arith.addf %148, %151 : vector<16x1xf32>
    %153 = math.rsqrt %152 : vector<16x1xf32>
    %154 = vector.broadcast %153 : vector<16x1xf32> to vector<16x32xf32>
    %155 = arith.mulf %150, %154 : vector<16x32xf32>
    %156 = vector.broadcast %34 : vector<1x32xf32> to vector<16x32xf32>
    %157 = arith.mulf %155, %156 : vector<16x32xf32>
    %158 = vector.broadcast %35 : vector<1x32xf32> to vector<16x32xf32>
    %159 = arith.addf %157, %158 : vector<16x32xf32>
    %c1_56 = arith.constant 1 : index
    %c0_57 = arith.constant 0 : index
    %c0_58 = arith.constant 0 : index
    %160 = vector.load %arg3[%c1_56, %c0_57, %c0_58] : memref<2x32x128xf32, #tpu.memory_space<vmem>>, vector<1x32x128xf32>
    %161 = vector.shape_cast %160 : vector<1x32x128xf32> to vector<32x128xf32>
    %c10 = arith.constant 10 : index
    %c0_59 = arith.constant 0 : index
    %162 = vector.load %arg6[%c10, %c0_59] : memref<18x96xf32, #tpu.memory_space<vmem>>, vector<1x96xf32>
    %c11 = arith.constant 11 : index
    %c0_60 = arith.constant 0 : index
    %163 = vector.load %arg6[%c11, %c0_60] : memref<18x96xf32, #tpu.memory_space<vmem>>, vector<1x32xf32>
    %c12 = arith.constant 12 : index
    %c0_61 = arith.constant 0 : index
    %164 = vector.load %arg6[%c12, %c0_61] : memref<18x96xf32, #tpu.memory_space<vmem>>, vector<1x32xf32>
    %c13 = arith.constant 13 : index
    %c0_62 = arith.constant 0 : index
    %165 = vector.load %arg6[%c13, %c0_62] : memref<18x96xf32, #tpu.memory_space<vmem>>, vector<1x32xf32>
    %c14 = arith.constant 14 : index
    %c0_63 = arith.constant 0 : index
    %166 = vector.load %arg6[%c14, %c0_63] : memref<18x96xf32, #tpu.memory_space<vmem>>, vector<1x64xf32>
    %c15 = arith.constant 15 : index
    %c0_64 = arith.constant 0 : index
    %167 = vector.load %arg6[%c15, %c0_64] : memref<18x96xf32, #tpu.memory_space<vmem>>, vector<1x32xf32>
    %c16 = arith.constant 16 : index
    %c0_65 = arith.constant 0 : index
    %168 = vector.load %arg6[%c16, %c0_65] : memref<18x96xf32, #tpu.memory_space<vmem>>, vector<1x32xf32>
    %c17 = arith.constant 17 : index
    %c0_66 = arith.constant 0 : index
    %169 = vector.load %arg6[%c17, %c0_66] : memref<18x96xf32, #tpu.memory_space<vmem>>, vector<1x32xf32>
    %170 = vector.extract_strided_slice %161 {offsets = [0, 0], sizes = [32, 96], strides = [1, 1]} : vector<32x128xf32> to vector<32x96xf32>
    %cst_67 = arith.constant dense<0.000000e+00> : vector<16x96xf32>
    %171 = tpu.matmul %159, %170, %cst_67 {dimension_numbers = #tpu.dot_dimension_numbers<[1], [0], [0], [1], [0, 0, 1, 1], [], []>} : vector<16x32xf32>, vector<32x96xf32>, vector<16x96xf32> -> vector<16x96xf32>
    %172 = vector.broadcast %162 : vector<1x96xf32> to vector<16x96xf32>
    %173 = arith.addf %171, %172 : vector<16x96xf32>
    %174 = vector.extract_strided_slice %173 {offsets = [0, 0], sizes = [16, 16], strides = [1, 1]} : vector<16x96xf32> to vector<16x16xf32>
    %175 = vector.shape_cast %174 : vector<16x16xf32> to vector<2x8x16xf32>
    %176 = vector.extract_strided_slice %173 {offsets = [0, 32], sizes = [16, 16], strides = [1, 1]} : vector<16x96xf32> to vector<16x16xf32>
    %177 = vector.shape_cast %176 : vector<16x16xf32> to vector<2x8x16xf32>
    %178 = vector.extract_strided_slice %173 {offsets = [0, 64], sizes = [16, 16], strides = [1, 1]} : vector<16x96xf32> to vector<16x16xf32>
    %179 = vector.shape_cast %178 : vector<16x16xf32> to vector<2x8x16xf32>
    "tpu.trace_start"() <{level = 10 : i32, message = "bqd,bkd->bqk"}> : () -> ()
    %cst_68 = arith.constant dense<0.000000e+00> : vector<2x8x8xf32>
    %180 = tpu.matmul %175, %177, %cst_68 {dimension_numbers = #tpu.dot_dimension_numbers<[2], [2], [1], [1], [0, 0, 0, 1, 1, 1], [0], [0]>} : vector<2x8x16xf32>, vector<2x8x16xf32>, vector<2x8x8xf32> -> vector<2x8x8xf32>
    "tpu.trace_stop"() : () -> ()
    %cst_69 = arith.constant 2.500000e-01 : f32
    %181 = vector.broadcast %cst_69 : f32 to vector<2x8x8xf32>
    %182 = arith.mulf %180, %181 : vector<2x8x8xf32>
    %183 = vector.broadcast %25 : vector<2x1x8xf32> to vector<2x8x8xf32>
    %184 = arith.addf %182, %183 : vector<2x8x8xf32>
    %cst_70 = arith.constant dense<0xFF800000> : vector<2x8xf32>
    %185 = vector.multi_reduction <maximumf>, %184, %cst_70 [2] : vector<2x8x8xf32> to vector<2x8xf32>
    %186 = vector.shape_cast %185 : vector<2x8xf32> to vector<2x8x1xf32>
    %187 = vector.broadcast %186 : vector<2x8x1xf32> to vector<2x8x8xf32>
    %188 = arith.subf %184, %187 : vector<2x8x8xf32>
    %189 = math.exp %188 : vector<2x8x8xf32>
    %cst_71 = arith.constant dense<0.000000e+00> : vector<2x8xf32>
    %190 = vector.multi_reduction <add>, %189, %cst_71 [2] : vector<2x8x8xf32> to vector<2x8xf32>
    %191 = vector.shape_cast %190 : vector<2x8xf32> to vector<2x8x1xf32>
    %192 = tpu.reciprocal %191 {approx = true} : vector<2x8x1xf32> -> vector<2x8x1xf32>
    %193 = vector.broadcast %192 : vector<2x8x1xf32> to vector<2x8x8xf32>
    %194 = arith.mulf %189, %193 : vector<2x8x8xf32>
    "tpu.trace_start"() <{level = 10 : i32, message = "bqk,bkd->bqd"}> : () -> ()
    %cst_72 = arith.constant dense<0.000000e+00> : vector<2x8x16xf32>
    %195 = tpu.matmul %194, %179, %cst_72 {dimension_numbers = #tpu.dot_dimension_numbers<[2], [1], [1], [2], [0, 0, 0, 1, 1, 2], [0], [0]>} : vector<2x8x8xf32>, vector<2x8x16xf32>, vector<2x8x16xf32> -> vector<2x8x16xf32>
    "tpu.trace_stop"() : () -> ()
    %196 = vector.shape_cast %195 : vector<2x8x16xf32> to vector<16x16xf32>
    %197 = vector.extract_strided_slice %173 {offsets = [0, 16], sizes = [16, 16], strides = [1, 1]} : vector<16x96xf32> to vector<16x16xf32>
    %198 = vector.shape_cast %197 : vector<16x16xf32> to vector<2x8x16xf32>
    %199 = vector.extract_strided_slice %173 {offsets = [0, 48], sizes = [16, 16], strides = [1, 1]} : vector<16x96xf32> to vector<16x16xf32>
    %200 = vector.shape_cast %199 : vector<16x16xf32> to vector<2x8x16xf32>
    %201 = vector.extract_strided_slice %173 {offsets = [0, 80], sizes = [16, 16], strides = [1, 1]} : vector<16x96xf32> to vector<16x16xf32>
    %202 = vector.shape_cast %201 : vector<16x16xf32> to vector<2x8x16xf32>
    "tpu.trace_start"() <{level = 10 : i32, message = "bqd,bkd->bqk"}> : () -> ()
    %cst_73 = arith.constant dense<0.000000e+00> : vector<2x8x8xf32>
    %203 = tpu.matmul %198, %200, %cst_73 {dimension_numbers = #tpu.dot_dimension_numbers<[2], [2], [1], [1], [0, 0, 0, 1, 1, 1], [0], [0]>} : vector<2x8x16xf32>, vector<2x8x16xf32>, vector<2x8x8xf32> -> vector<2x8x8xf32>
    "tpu.trace_stop"() : () -> ()
    %cst_74 = arith.constant 2.500000e-01 : f32
    %204 = vector.broadcast %cst_74 : f32 to vector<2x8x8xf32>
    %205 = arith.mulf %203, %204 : vector<2x8x8xf32>
    %206 = vector.broadcast %25 : vector<2x1x8xf32> to vector<2x8x8xf32>
    %207 = arith.addf %205, %206 : vector<2x8x8xf32>
    %cst_75 = arith.constant dense<0xFF800000> : vector<2x8xf32>
    %208 = vector.multi_reduction <maximumf>, %207, %cst_75 [2] : vector<2x8x8xf32> to vector<2x8xf32>
    %209 = vector.shape_cast %208 : vector<2x8xf32> to vector<2x8x1xf32>
    %210 = vector.broadcast %209 : vector<2x8x1xf32> to vector<2x8x8xf32>
    %211 = arith.subf %207, %210 : vector<2x8x8xf32>
    %212 = math.exp %211 : vector<2x8x8xf32>
    %cst_76 = arith.constant dense<0.000000e+00> : vector<2x8xf32>
    %213 = vector.multi_reduction <add>, %212, %cst_76 [2] : vector<2x8x8xf32> to vector<2x8xf32>
    %214 = vector.shape_cast %213 : vector<2x8xf32> to vector<2x8x1xf32>
    %215 = tpu.reciprocal %214 {approx = true} : vector<2x8x1xf32> -> vector<2x8x1xf32>
    %216 = vector.broadcast %215 : vector<2x8x1xf32> to vector<2x8x8xf32>
    %217 = arith.mulf %212, %216 : vector<2x8x8xf32>
    "tpu.trace_start"() <{level = 10 : i32, message = "bqk,bkd->bqd"}> : () -> ()
    %cst_77 = arith.constant dense<0.000000e+00> : vector<2x8x16xf32>
    %218 = tpu.matmul %217, %202, %cst_77 {dimension_numbers = #tpu.dot_dimension_numbers<[2], [1], [1], [2], [0, 0, 0, 1, 1, 2], [0], [0]>} : vector<2x8x8xf32>, vector<2x8x16xf32>, vector<2x8x16xf32> -> vector<2x8x16xf32>
    "tpu.trace_stop"() : () -> ()
    %219 = vector.shape_cast %218 : vector<2x8x16xf32> to vector<16x16xf32>
    %220 = tpu.concatenate %196, %219 in 1 : vector<16x16xf32>, vector<16x16xf32> -> vector<16x32xf32>
    %221 = vector.extract_strided_slice %161 {offsets = [0, 96], sizes = [32, 32], strides = [1, 1]} : vector<32x128xf32> to vector<32x32xf32>
    %cst_78 = arith.constant dense<0.000000e+00> : vector<16x32xf32>
    %222 = tpu.matmul %220, %221, %cst_78 {dimension_numbers = #tpu.dot_dimension_numbers<[1], [0], [0], [1], [0, 0, 1, 1], [], []>} : vector<16x32xf32>, vector<32x32xf32>, vector<16x32xf32> -> vector<16x32xf32>
    %223 = vector.broadcast %163 : vector<1x32xf32> to vector<16x32xf32>
    %224 = arith.addf %222, %223 : vector<16x32xf32>
    %225 = arith.addf %159, %224 : vector<16x32xf32>
    %cst_79 = arith.constant dense<0.000000e+00> : vector<16xf32>
    %226 = vector.multi_reduction <add>, %225, %cst_79 [1] : vector<16x32xf32> to vector<16xf32>
    %227 = vector.shape_cast %226 : vector<16xf32> to vector<16x1xf32>
    %cst_80 = arith.constant 3.200000e+01 : f32
    %228 = vector.broadcast %cst_80 : f32 to vector<16x1xf32>
    %229 = arith.divf %227, %228 : vector<16x1xf32>
    %230 = vector.broadcast %229 : vector<16x1xf32> to vector<16x32xf32>
    %231 = arith.subf %225, %230 : vector<16x32xf32>
    %232 = arith.mulf %231, %231 : vector<16x32xf32>
    %cst_81 = arith.constant dense<0.000000e+00> : vector<16xf32>
    %233 = vector.multi_reduction <add>, %232, %cst_81 [1] : vector<16x32xf32> to vector<16xf32>
    %234 = vector.shape_cast %233 : vector<16xf32> to vector<16x1xf32>
    %cst_82 = arith.constant 3.200000e+01 : f32
    %235 = vector.broadcast %cst_82 : f32 to vector<16x1xf32>
    %236 = arith.divf %234, %235 : vector<16x1xf32>
    %237 = vector.broadcast %229 : vector<16x1xf32> to vector<16x32xf32>
    %238 = arith.subf %225, %237 : vector<16x32xf32>
    %cst_83 = arith.constant 9.99999996E-13 : f32
    %239 = vector.broadcast %cst_83 : f32 to vector<16x1xf32>
    %240 = arith.addf %236, %239 : vector<16x1xf32>
    %241 = math.rsqrt %240 : vector<16x1xf32>
    %242 = vector.broadcast %241 : vector<16x1xf32> to vector<16x32xf32>
    %243 = arith.mulf %238, %242 : vector<16x32xf32>
    %244 = vector.broadcast %164 : vector<1x32xf32> to vector<16x32xf32>
    %245 = arith.mulf %243, %244 : vector<16x32xf32>
    %246 = vector.broadcast %165 : vector<1x32xf32> to vector<16x32xf32>
    %247 = arith.addf %245, %246 : vector<16x32xf32>
    %c1_84 = arith.constant 1 : index
    %c0_85 = arith.constant 0 : index
    %c0_86 = arith.constant 0 : index
    %248 = vector.load %arg4[%c1_84, %c0_85, %c0_86] : memref<2x32x64xf32, #tpu.memory_space<vmem>>, vector<1x32x64xf32>
    %249 = vector.shape_cast %248 : vector<1x32x64xf32> to vector<32x64xf32>
    %cst_87 = arith.constant dense<0.000000e+00> : vector<16x64xf32>
    %250 = tpu.matmul %247, %249, %cst_87 {dimension_numbers = #tpu.dot_dimension_numbers<[1], [0], [0], [1], [0, 0, 1, 1], [], []>} : vector<16x32xf32>, vector<32x64xf32>, vector<16x64xf32> -> vector<16x64xf32>
    %251 = vector.broadcast %166 : vector<1x64xf32> to vector<16x64xf32>
    %252 = arith.addf %250, %251 : vector<16x64xf32>
    %253 = arith.mulf %252, %252 : vector<16x64xf32>
    %254 = arith.mulf %252, %253 : vector<16x64xf32>
    %cst_88 = arith.constant 4.471500e-02 : f32
    %255 = vector.broadcast %cst_88 : f32 to vector<16x64xf32>
    %256 = arith.mulf %255, %254 : vector<16x64xf32>
    %257 = arith.addf %252, %256 : vector<16x64xf32>
    %cst_89 = arith.constant 0.797884583 : f32
    %258 = vector.broadcast %cst_89 : f32 to vector<16x64xf32>
    %259 = arith.mulf %258, %257 : vector<16x64xf32>
    %260 = math.tanh %259 : vector<16x64xf32>
    %cst_90 = arith.constant 1.000000e+00 : f32
    %261 = vector.broadcast %cst_90 : f32 to vector<16x64xf32>
    %262 = arith.addf %261, %260 : vector<16x64xf32>
    %cst_91 = arith.constant 5.000000e-01 : f32
    %263 = vector.broadcast %cst_91 : f32 to vector<16x64xf32>
    %264 = arith.mulf %263, %262 : vector<16x64xf32>
    %265 = arith.mulf %252, %264 : vector<16x64xf32>
    %c1_92 = arith.constant 1 : index
    %c0_93 = arith.constant 0 : index
    %c0_94 = arith.constant 0 : index
    %266 = vector.load %arg5[%c1_92, %c0_93, %c0_94] : memref<2x64x32xf32, #tpu.memory_space<vmem>>, vector<1x64x32xf32>
    %267 = vector.shape_cast %266 : vector<1x64x32xf32> to vector<64x32xf32>
    %cst_95 = arith.constant dense<0.000000e+00> : vector<16x32xf32>
    %268 = tpu.matmul %265, %267, %cst_95 {dimension_numbers = #tpu.dot_dimension_numbers<[1], [0], [0], [1], [0, 0, 1, 1], [], []>} : vector<16x64xf32>, vector<64x32xf32>, vector<16x32xf32> -> vector<16x32xf32>
    %269 = vector.broadcast %167 : vector<1x32xf32> to vector<16x32xf32>
    %270 = arith.addf %268, %269 : vector<16x32xf32>
    %271 = arith.addf %247, %270 : vector<16x32xf32>
    %272 = vector.extract_strided_slice %271 {offsets = [0, 0], sizes = [1, 32], strides = [1, 1]} : vector<16x32xf32> to vector<1x32xf32>
    %273 = vector.extract_strided_slice %271 {offsets = [8, 0], sizes = [1, 32], strides = [1, 1]} : vector<16x32xf32> to vector<1x32xf32>
    %274 = tpu.concatenate %272, %273 in 0 : vector<1x32xf32>, vector<1x32xf32> -> vector<2x32xf32>
    %cst_96 = arith.constant dense<0.000000e+00> : vector<2xf32>
    %275 = vector.multi_reduction <add>, %274, %cst_96 [1] : vector<2x32xf32> to vector<2xf32>
    %276 = vector.shape_cast %275 : vector<2xf32> to vector<2x1xf32>
    %cst_97 = arith.constant 3.200000e+01 : f32
    %277 = vector.broadcast %cst_97 : f32 to vector<2x1xf32>
    %278 = arith.divf %276, %277 : vector<2x1xf32>
    %279 = vector.broadcast %278 : vector<2x1xf32> to vector<2x32xf32>
    %280 = arith.subf %274, %279 : vector<2x32xf32>
    %281 = arith.mulf %280, %280 : vector<2x32xf32>
    %cst_98 = arith.constant dense<0.000000e+00> : vector<2xf32>
    %282 = vector.multi_reduction <add>, %281, %cst_98 [1] : vector<2x32xf32> to vector<2xf32>
    %283 = vector.shape_cast %282 : vector<2xf32> to vector<2x1xf32>
    %cst_99 = arith.constant 3.200000e+01 : f32
    %284 = vector.broadcast %cst_99 : f32 to vector<2x1xf32>
    %285 = arith.divf %283, %284 : vector<2x1xf32>
    %286 = vector.broadcast %278 : vector<2x1xf32> to vector<2x32xf32>
    %287 = arith.subf %274, %286 : vector<2x32xf32>
    %cst_100 = arith.constant 9.99999996E-13 : f32
    %288 = vector.broadcast %cst_100 : f32 to vector<2x1xf32>
    %289 = arith.addf %285, %288 : vector<2x1xf32>
    %290 = math.rsqrt %289 : vector<2x1xf32>
    %291 = vector.broadcast %290 : vector<2x1xf32> to vector<2x32xf32>
    %292 = arith.mulf %287, %291 : vector<2x32xf32>
    %293 = vector.broadcast %168 : vector<1x32xf32> to vector<2x32xf32>
    %294 = arith.mulf %292, %293 : vector<2x32xf32>
    %295 = vector.broadcast %169 : vector<1x32xf32> to vector<2x32xf32>
    %296 = arith.addf %294, %295 : vector<2x32xf32>
    %c0_101 = arith.constant 0 : index
    %c0_102 = arith.constant 0 : index
    %297 = vector.load %arg7[%c0_101, %c0_102] : memref<2x32xf32, #tpu.memory_space<vmem>>, vector<2x32xf32>
    tpu.vector_store %arg7[%c0_101, %c0_102], %296 {strides = array<i32>} : memref<2x32xf32, #tpu.memory_space<vmem>>, vector<2x32xf32>,
    return
  }
  func.func @transform_0(%arg0: i32) -> (i32, i32) {
    %c0_i32 = arith.constant 0 : i32
    %c0_i32_0 = arith.constant 0 : i32
    %c0_i32_1 = arith.constant 0 : i32
    return %c0_i32, %c0_i32_0 : i32, i32
  }
  func.func @transform_1(%arg0: i32) -> (i32, i32, i32) {
    %c0_i32 = arith.constant 0 : i32
    %c0_i32_0 = arith.constant 0 : i32
    %c0_i32_1 = arith.constant 0 : i32
    %c0_i32_2 = arith.constant 0 : i32
    return %c0_i32, %c0_i32_0, %c0_i32_1 : i32, i32, i32
  }
  func.func @transform_2(%arg0: i32) -> (i32, i32, i32) {
    %c0_i32 = arith.constant 0 : i32
    %c0_i32_0 = arith.constant 0 : i32
    %c0_i32_1 = arith.constant 0 : i32
    %c0_i32_2 = arith.constant 0 : i32
    return %c0_i32, %c0_i32_0, %c0_i32_1 : i32, i32, i32
  }
  func.func @transform_3(%arg0: i32) -> (i32, i32, i32) {
    %c0_i32 = arith.constant 0 : i32
    %c0_i32_0 = arith.constant 0 : i32
    %c0_i32_1 = arith.constant 0 : i32
    %c0_i32_2 = arith.constant 0 : i32
    return %c0_i32, %c0_i32_0, %c0_i32_1 : i32, i32, i32
  }
  func.func @transform_4(%arg0: i32) -> (i32, i32, i32) {
    %c0_i32 = arith.constant 0 : i32
    %c0_i32_0 = arith.constant 0 : i32
    %c0_i32_1 = arith.constant 0 : i32
    %c0_i32_2 = arith.constant 0 : i32
    return %c0_i32, %c0_i32_0, %c0_i32_1 : i32, i32, i32
  }
  func.func @transform_5(%arg0: i32) -> (i32, i32) {
    %c0_i32 = arith.constant 0 : i32
    %c0_i32_0 = arith.constant 0 : i32
    %c0_i32_1 = arith.constant 0 : i32
    return %c0_i32, %c0_i32_0 : i32, i32
  }
  func.func @transform_6(%arg0: i32) -> (i32, i32) {
    %c0_i32 = arith.constant 0 : i32
    %c0_i32_0 = arith.constant 0 : i32
    %c0_i32_1 = arith.constant 0 : i32
    return %c0_i32, %c0_i32_0 : i32, i32
  }
}

</mosaic_0001>

<llo_original>
// kernel: transformer_forward.1
$region0: #{transformer_forward.1}
  #allocation0 [shape = 'u32[]', space=smem, size = 0x4, offset = 0x4, fixed_abs, tag = 'smem constant byte address 0x4 - core index']
  #allocation1 [shape = 'u32[72,128]{1,0:T(1,128)}', space=vmem, size = 0x9000, scoped, tag = 'internal scratch']
  %s0 = inlined_call_operand.vmem [shape: f32[16,32], index: 0, kind: input, shape index: {}]
  %s1 = inlined_call_operand.vmem [shape: f32[2,1,8], index: 1, kind: input, shape index: {}]
  %s2 = inlined_call_operand.vmem [shape: f32[2,32,128], index: 2, kind: input, shape index: {}]
  %s3 = inlined_call_operand.vmem [shape: f32[2,32,64], index: 3, kind: input, shape index: {}]
  %s4 = inlined_call_operand.vmem [shape: f32[2,64,32], index: 4, kind: input, shape index: {}]
  %s5 = inlined_call_operand.vmem [shape: f32[18,96], index: 5, kind: input, shape index: {}]
  %s6 = inlined_call_operand.hbm [shape: f32[2,32], index: 6, kind: output, shape index: {}]
  %s7 = sld [smem:[#allocation0]]
  $region34: #{transformer_forward.1} parent=0
    _
  %s9 = ssub.s32 1, %s7
  %s10 = scalar_select 0, %s9, %s7
  $region1: #{transformer_forward.1} parent=0
    #allocation2 [shape = 'u8[1024]{0}', space=vmem, size = 0x400, scoped, tag = 'output window, operand 0, single buffered']
    #allocation3 [shape = 's32[1]{0}', space=sflag, size = 0x4, scoped, tag = 'scoped memory for transformer_forward.1']
    %11 = vsyncpa [#allocation3], 0
    // Predicated region
    $region2: #{transformer_forward.1} parent=1 // pred_check
      _
    $region3: #{transformer_forward.1} parent=1 // pred_check_branch
      %13 = sbr.rel (0) target = $region5
    $region4: #{transformer_forward.1} parent=1 // pred_region
      _
    $region5: #{transformer_forward.1} parent=1 // pred_fallthru
      _
    // Predicated region
    $region6: #{transformer_forward.1} parent=1 // pred_check
      _
    $region7: #{transformer_forward.1} parent=1 // pred_check_branch
      %15 = sbr.rel (0) target = $region9
    $region8: #{transformer_forward.1} parent=1 // pred_region
      _
    $region9: #{transformer_forward.1} parent=1 // pred_fallthru
      _
    // Predicated region
    $region10: #{transformer_forward.1} parent=1 // pred_check
      _
    $region11: #{transformer_forward.1} parent=1 // pred_check_branch
      %17 = sbr.rel (0) target = $region13
    $region12: #{transformer_forward.1} parent=1 // pred_region
      _
    $region13: #{transformer_forward.1} parent=1 // pred_fallthru
      _
    // Predicated region
    $region14: #{transformer_forward.1} parent=1 // pred_check
      _
    $region15: #{transformer_forward.1} parent=1 // pred_check_branch
      %19 = sbr.rel (0) target = $region17
    $region16: #{transformer_forward.1} parent=1 // pred_region
      _
    $region17: #{transformer_forward.1} parent=1 // pred_fallthru
      _
    // Predicated region
    $region18: #{transformer_forward.1} parent=1 // pred_check
      _
    $region19: #{transformer_forward.1} parent=1 // pred_check_branch
      %21 = sbr.rel (0) target = $region21
    $region20: #{transformer_forward.1} parent=1 // pred_region
      _
    $region21: #{transformer_forward.1} parent=1 // pred_fallthru
      _
    // Predicated region
    $region22: #{transformer_forward.1} parent=1 // pred_check
      _
    $region23: #{transformer_forward.1} parent=1 // pred_check_branch
      %23 = sbr.rel (0) target = $region25
    $region24: #{transformer_forward.1} parent=1 // pred_region
      _
    $region25: #{transformer_forward.1} parent=1 // pred_fallthru
      _
    %v24 = vld [vmem:[%s0] sm:$0xff]
    %v25 = vld [vmem:[%s0 + $0x8] sm:$0xff]
    %v26 = vld [vmem:[%s5] sm:$0x1]
    %v27 = vld [vmem:[%s5 + $0x1] sm:$0x1]
    %vm28 = vcmask 261120
    %v29 = vsel %vm28, %v24, 0.0
    %30 = vadd.xlane.f32.xlu0 %v29
    %v31 = vpop.xlane.xlu0 %30
    %v32 = vsel %vm28, %v25, 0.0
    %33 = vadd.xlane.f32.xlu0 %v32
    %v34 = vpop.xlane.xlu0 %33
    %v35 = vrcp.pop 32.0
    %v36 = vmul.f32 32.0, %v35
    %v37 = vsub.f32 1.0, %v36
    %v38 = vmul.f32 %v35, %v37
    %v39 = vadd.f32 %v35, %v38
    %vm40 = vweird.f32 %v35
    %v41 = vsel %vm40, %v35, %v39
    %v42 = vmul.f32 %v31, %v41
    %v43 = vmul.f32 %v34, %v41
    %v44 = vsub.f32 %v24, %v42
    %v45 = vsub.f32 %v25, %v43
    %v46 = vmul.f32 %v44, %v44
    %v47 = vmul.f32 %v45, %v45
    %v48 = vsel %vm28, %v46, 0.0
    %49 = vadd.xlane.f32.xlu0 %v48
    %v50 = vpop.xlane.xlu0 %49
    %v51 = vsel %vm28, %v47, 0.0
    %52 = vadd.xlane.f32.xlu0 %v51
    %v53 = vpop.xlane.xlu0 %52
    %v54 = vmul.f32 %v50, %v41
    %v55 = vmul.f32 %v53, %v41
    %v56 = vadd.f32 %v54, 1e-12
    %v57 = vadd.f32 %v55, 1e-12
    %v58 = vrsqrt.pop %v56
    %v59 = vmul.f32 %v58, %v56
    %v60 = vmul.f32 %v59, %v58
    %v61 = vmul.f32 0.5, %v60
    %v62 = vsub.f32 1.5, %v61
    %v63 = vmul.f32 %v58, %v62
    %vm64 = vweird.f32 %v56
    %vm65 = vweird.f32 %v58
    %vm66 = vmor %vm64, %vm65
    %v67 = vsel %vm66, %v58, %v63
    %v68 = vrsqrt.pop %v57
    %v69 = vmul.f32 %v68, %v57
    %v70 = vmul.f32 %v69, %v68
    %v71 = vmul.f32 0.5, %v70
    %v72 = vsub.f32 1.5, %v71
    %v73 = vmul.f32 %v68, %v72
    %vm74 = vweird.f32 %v57
    %vm75 = vweird.f32 %v68
    %vm76 = vmor %vm74, %vm75
    %v77 = vsel %vm76, %v68, %v73
    %v78 = vmul.f32 %v44, %v67
    %v79 = vmul.f32 %v45, %v77
    %v80 = vperm.slane %v26, 0
    %v81 = vmul.f32 %v78, %v80
    %v82 = vmul.f32 %v79, %v80
    %v83 = vperm.slane %v27, 0
    %v84 = vadd.f32 %v81, %v83
    %v85 = vadd.f32 %v82, %v83
    %v86 = vld [vmem:[%s1] sm:$0x1]
    %v87 = vld [vmem:[%s1 + $0x1] sm:$0x1]
    %v88 = vld [vmem:[%s2] sm:$0xff]
    %v89 = vld [vmem:[%s2 + $0x8] sm:$0xff]
    %v90 = vld [vmem:[%s2 + $0x10] sm:$0xff]
    %v91 = vld [vmem:[%s2 + $0x18] sm:$0xff]
    %v92 = vld [vmem:[%s5 + $0x2] sm:$0x1]
    %v93 = vld [vmem:[%s5 + $0x3] sm:$0x1]
    %v94 = vld [vmem:[%s5 + $0x4] sm:$0x1]
    %v95 = vld [vmem:[%s5 + $0x5] sm:$0x1]
    %v96 = vld [vmem:[%s5 + $0x6] sm:$0x1]
    %v97 = vld [vmem:[%s5 + $0x7] sm:$0x1]
    %v98 = vld [vmem:[%s5 + $0x8] sm:$0x1]
    %v99 = vld [vmem:[%s5 + $0x9] sm:$0x1]
    %v100 = vperm.slane %v92, 0
    %v102 = vsel %vm28, %v84, 0
    %v105 = vsel %vm28, %v85, 0
    %107 = vmatpush.msra.mxu0 0.0
    %108 = vmatpush.msra.mxu0 0.0
    %109 = vmatpush.msra.mxu0 0.0
    %110 = vmatpush.msra.mxu0 0.0
    %111 = vmatpush.msra.mxu0 0.0
    %112 = vmatpush.msra.mxu0 0.0
    %113 = vmatpush.msra.mxu0 0.0
    %114 = vmatpush.msra.mxu0 0.0
    %115 = vmatpush.msra.mxu0 0.0
    %116 = vmatpush.msra.mxu0 0.0
    %117 = vmatpush.msra.mxu0 0.0
    %118 = vmatpush.msra.mxu0 0.0
    %119 = vmatpush.msra.mxu0 %v91
    %120 = vmatpush.msra.mxu0 %v90
    %121 = vmatpush.msra.mxu0 %v89
    %122 = vmatpush.msra.mxu0 %v88
    %123 = vmatmul.f32.gmra.mxu0 %v102
    %v124 = vpop.f32.mrf.mxu0
    %v125 = vadd.f32 %v100, %v124
    %126 = vmatmul.f32.gmra.mxu0 %v105
    %v127 = vpop.f32.mrf.mxu0
    %v128 = vadd.f32 %v100, %v127
    %129 = vdwg.mxu0
    %131 = vrot.lane.b32.xlu0 %v125, 96
    %v132 = vpop.permute.xlu0 %131
    %vm133 = vcmask 130048
    %v134 = vsel %vm133, %v125, 0
    %v136 = vsel %vm133, %v132, 0
    %138 = vmatpush.xpose.msra.mxu0 0.0
    %139 = vmatpush.xpose.msra.mxu0 0.0
    %140 = vmatpush.xpose.msra.mxu0 0.0
    %141 = vmatpush.xpose.msra.mxu0 0.0
    %142 = vmatpush.xpose.msra.mxu0 0.0
    %143 = vmatpush.xpose.msra.mxu0 0.0
    %144 = vmatpush.xpose.msra.mxu0 0.0
    %145 = vmatpush.xpose.msra.mxu0 0.0
    %146 = vmatpush.xpose.msra.mxu0 0.0
    %147 = vmatpush.xpose.msra.mxu0 0.0
    %148 = vmatpush.xpose.msra.mxu0 0.0
    %149 = vmatpush.xpose.msra.mxu0 0.0
    %150 = vmatpush.xpose.msra.mxu0 0.0
    %151 = vmatpush.xpose.msra.mxu0 0.0
    %152 = vmatpush.xpose.msra.mxu0 0.0
    %153 = vmatpush.xpose.msra.mxu0 %v136
    %154 = vmatmul.f32.gmra.mxu0 %v134
    %v155 = vpop.f32.mrf.mxu0
    %v156 = vadd.f32 0.0, %v155
    %157 = vdwg.mxu0
    %159 = vrot.lane.b32.xlu0 %v128, 96
    %v160 = vpop.permute.xlu0 %159
    %v161 = vsel %vm133, %v128, 0
    %v163 = vsel %vm133, %v160, 0
    %165 = vmatpush.xpose.msra.mxu0 0.0
    %166 = vmatpush.xpose.msra.mxu0 0.0
    %167 = vmatpush.xpose.msra.mxu0 0.0
    %168 = vmatpush.xpose.msra.mxu0 0.0
    %169 = vmatpush.xpose.msra.mxu0 0.0
    %170 = vmatpush.xpose.msra.mxu0 0.0
    %171 = vmatpush.xpose.msra.mxu0 0.0
    %172 = vmatpush.xpose.msra.mxu0 0.0
    %173 = vmatpush.xpose.msra.mxu0 0.0
    %174 = vmatpush.xpose.msra.mxu0 0.0
    %175 = vmatpush.xpose.msra.mxu0 0.0
    %176 = vmatpush.xpose.msra.mxu0 0.0
    %177 = vmatpush.xpose.msra.mxu0 0.0
    %178 = vmatpush.xpose.msra.mxu0 0.0
    %179 = vmatpush.xpose.msra.mxu0 0.0
    %180 = vmatpush.xpose.msra.mxu0 %v163
    %181 = vmatmul.f32.gmra.mxu0 %v161
    %v182 = vpop.f32.mrf.mxu0
    %v183 = vadd.f32 0.0, %v182
    %184 = vdwg.mxu0
    %v185 = vmul.f32 %v156, 0.25
    %v186 = vmul.f32 %v183, 0.25
    %v189 = vperm.slane %v86, 0
    %v190 = vperm.slane %v87, 0
    %v193 = vadd.f32 %v185, %v189
    %v194 = vadd.f32 %v186, %v190
    %vm195 = vcmask 64512
    %v196 = vsel %vm195, %v193, -inf
    %197 = vmax.xlane.f32.xlu0 %v196
    %v198 = vpop.xlane.xlu0 %197
    %v199 = vsel %vm195, %v194, -inf
    %200 = vmax.xlane.f32.xlu0 %v199
    %v201 = vpop.xlane.xlu0 %200
    %v202 = vsub.f32 %v193, %v198
    %v203 = vsub.f32 %v194, %v201
    %v204 = vmul.f32 %v202, 1.442695
    %v205 = vpow.pop %v204
    %v206 = vmul.f32 %v203, 1.442695
    %v207 = vpow.pop %v206
    %v208 = vsel %vm195, %v205, 0.0
    %209 = vadd.xlane.f32.xlu0 %v208
    %v210 = vpop.xlane.xlu0 %209
    %v211 = vsel %vm195, %v207, 0.0
    %212 = vadd.xlane.f32.xlu0 %v211
    %v213 = vpop.xlane.xlu0 %212
    %v214 = vrcp.pop %v210
    %v215 = vrcp.pop %v213
    %v216 = vmul.f32 %v205, %v214
    %v217 = vmul.f32 %v207, %v215
    %218 = vrot.lane.b32.xlu0 %v125, 64
    %v219 = vpop.permute.xlu0 %218
    %v222 = vsel %vm195, %v216, 0
    %224 = vmatpush.msra.mxu0 0.0
    %225 = vmatpush.msra.mxu0 0.0
    %226 = vmatpush.msra.mxu0 0.0
    %227 = vmatpush.msra.mxu0 0.0
    %228 = vmatpush.msra.mxu0 0.0
    %229 = vmatpush.msra.mxu0 0.0
    %230 = vmatpush.msra.mxu0 0.0
    %231 = vmatpush.msra.mxu0 0.0
    %232 = vmatpush.msra.mxu0 0.0
    %233 = vmatpush.msra.mxu0 0.0
    %234 = vmatpush.msra.mxu0 0.0
    %235 = vmatpush.msra.mxu0 0.0
    %236 = vmatpush.msra.mxu0 0.0
    %237 = vmatpush.msra.mxu0 0.0
    %238 = vmatpush.msra.mxu0 0.0
    %239 = vmatpush.msra.mxu0 %v219
    %240 = vmatmul.f32.gmra.mxu0 %v222
    %v241 = vpop.f32.mrf.mxu0
    %v242 = vadd.f32 0.0, %v241
    %243 = vdwg.mxu0
    %244 = vrot.lane.b32.xlu0 %v128, 64
    %v245 = vpop.permute.xlu0 %244
    %v248 = vsel %vm195, %v217, 0
    %250 = vmatpush.msra.mxu0 0.0
    %251 = vmatpush.msra.mxu0 0.0
    %252 = vmatpush.msra.mxu0 0.0
    %253 = vmatpush.msra.mxu0 0.0
    %254 = vmatpush.msra.mxu0 0.0
    %255 = vmatpush.msra.mxu0 0.0
    %256 = vmatpush.msra.mxu0 0.0
    %257 = vmatpush.msra.mxu0 0.0
    %258 = vmatpush.msra.mxu0 0.0
    %259 = vmatpush.msra.mxu0 0.0
    %260 = vmatpush.msra.mxu0 0.0
    %261 = vmatpush.msra.mxu0 0.0
    %262 = vmatpush.msra.mxu0 0.0
    %263 = vmatpush.msra.mxu0 0.0
    %264 = vmatpush.msra.mxu0 0.0
    %265 = vmatpush.msra.mxu0 %v245
    %266 = vmatmul.f32.gmra.mxu0 %v248
    %v267 = vpop.f32.mrf.mxu0
    %v268 = vadd.f32 0.0, %v267
    %269 = vdwg.mxu0
    %270 = vrot.lane.b32.xlu0 %v125, 112
    %v271 = vpop.permute.xlu0 %270
    %272 = vrot.lane.b32.xlu0 %v125, 80
    %v273 = vpop.permute.xlu0 %272
    %v274 = vsel %vm133, %v271, 0
    %v276 = vsel %vm133, %v273, 0
    %278 = vmatpush.xpose.msra.mxu0 0.0
    %279 = vmatpush.xpose.msra.mxu0 0.0
    %280 = vmatpush.xpose.msra.mxu0 0.0
    %281 = vmatpush.xpose.msra.mxu0 0.0
    %282 = vmatpush.xpose.msra.mxu0 0.0
    %283 = vmatpush.xpose.msra.mxu0 0.0
    %284 = vmatpush.xpose.msra.mxu0 0.0
    %285 = vmatpush.xpose.msra.mxu0 0.0
    %286 = vmatpush.xpose.msra.mxu0 0.0
    %287 = vmatpush.xpose.msra.mxu0 0.0
    %288 = vmatpush.xpose.msra.mxu0 0.0
    %289 = vmatpush.xpose.msra.mxu0 0.0
    %290 = vmatpush.xpose.msra.mxu0 0.0
    %291 = vmatpush.xpose.msra.mxu0 0.0
    %292 = vmatpush.xpose.msra.mxu0 0.0
    %293 = vmatpush.xpose.msra.mxu0 %v276
    %294 = vmatmul.f32.gmra.mxu0 %v274
    %v295 = vpop.f32.mrf.mxu0
    %v296 = vadd.f32 0.0, %v295
    %297 = vdwg.mxu0
    %298 = vrot.lane.b32.xlu0 %v128, 112
    %v299 = vpop.permute.xlu0 %298
    %300 = vrot.lane.b32.xlu0 %v128, 80
    %v301 = vpop.permute.xlu0 %300
    %v302 = vsel %vm133, %v299, 0
    %v304 = vsel %vm133, %v301, 0
    %306 = vmatpush.xpose.msra.mxu0 0.0
    %307 = vmatpush.xpose.msra.mxu0 0.0
    %308 = vmatpush.xpose.msra.mxu0 0.0
    %309 = vmatpush.xpose.msra.mxu0 0.0
    %310 = vmatpush.xpose.msra.mxu0 0.0
    %311 = vmatpush.xpose.msra.mxu0 0.0
    %312 = vmatpush.xpose.msra.mxu0 0.0
    %313 = vmatpush.xpose.msra.mxu0 0.0
    %314 = vmatpush.xpose.msra.mxu0 0.0
    %315 = vmatpush.xpose.msra.mxu0 0.0
    %316 = vmatpush.xpose.msra.mxu0 0.0
    %317 = vmatpush.xpose.msra.mxu0 0.0
    %318 = vmatpush.xpose.msra.mxu0 0.0
    %319 = vmatpush.xpose.msra.mxu0 0.0
    %320 = vmatpush.xpose.msra.mxu0 0.0
    %321 = vmatpush.xpose.msra.mxu0 %v304
    %322 = vmatmul.f32.gmra.mxu0 %v302
    %v323 = vpop.f32.mrf.mxu0
    %v324 = vadd.f32 0.0, %v323
    %325 = vdwg.mxu0
    %v326 = vmul.f32 %v296, 0.25
    %v327 = vmul.f32 %v324, 0.25
    %v328 = vadd.f32 %v326, %v189
    %v329 = vadd.f32 %v327, %v190
    %v330 = vsel %vm195, %v328, -inf
    %331 = vmax.xlane.f32.xlu0 %v330
    %v332 = vpop.xlane.xlu0 %331
    %v333 = vsel %vm195, %v329, -inf
    %334 = vmax.xlane.f32.xlu0 %v333
    %v335 = vpop.xlane.xlu0 %334
    %v336 = vsub.f32 %v328, %v332
    %v337 = vsub.f32 %v329, %v335
    %v338 = vmul.f32 %v336, 1.442695
    %v339 = vpow.pop %v338
    %v340 = vmul.f32 %v337, 1.442695
    %v341 = vpow.pop %v340
    %v342 = vsel %vm195, %v339, 0.0
    %343 = vadd.xlane.f32.xlu0 %v342
    %v344 = vpop.xlane.xlu0 %343
    %v345 = vsel %vm195, %v341, 0.0
    %346 = vadd.xlane.f32.xlu0 %v345
    %v347 = vpop.xlane.xlu0 %346
    %v348 = vrcp.pop %v344
    %v349 = vrcp.pop %v347
    %v350 = vmul.f32 %v339, %v348
    %v351 = vmul.f32 %v341, %v349
    %352 = vrot.lane.b32.xlu0 %v125, 48
    %v353 = vpop.permute.xlu0 %352
    %v356 = vsel %vm195, %v350, 0
    %358 = vmatpush.msra.mxu0 0.0
    %359 = vmatpush.msra.mxu0 0.0
    %360 = vmatpush.msra.mxu0 0.0
    %361 = vmatpush.msra.mxu0 0.0
    %362 = vmatpush.msra.mxu0 0.0
    %363 = vmatpush.msra.mxu0 0.0
    %364 = vmatpush.msra.mxu0 0.0
    %365 = vmatpush.msra.mxu0 0.0
    %366 = vmatpush.msra.mxu0 0.0
    %367 = vmatpush.msra.mxu0 0.0
    %368 = vmatpush.msra.mxu0 0.0
    %369 = vmatpush.msra.mxu0 0.0
    %370 = vmatpush.msra.mxu0 0.0
    %371 = vmatpush.msra.mxu0 0.0
    %372 = vmatpush.msra.mxu0 0.0
    %373 = vmatpush.msra.mxu0 %v353
    %374 = vmatmul.f32.gmra.mxu0 %v356
    %v375 = vpop.f32.mrf.mxu0
    %v376 = vadd.f32 0.0, %v375
    %377 = vdwg.mxu0
    %378 = vrot.lane.b32.xlu0 %v128, 48
    %v379 = vpop.permute.xlu0 %378
    %v382 = vsel %vm195, %v351, 0
    %384 = vmatpush.msra.mxu0 0.0
    %385 = vmatpush.msra.mxu0 0.0
    %386 = vmatpush.msra.mxu0 0.0
    %387 = vmatpush.msra.mxu0 0.0
    %388 = vmatpush.msra.mxu0 0.0
    %389 = vmatpush.msra.mxu0 0.0
    %390 = vmatpush.msra.mxu0 0.0
    %391 = vmatpush.msra.mxu0 0.0
    %392 = vmatpush.msra.mxu0 0.0
    %393 = vmatpush.msra.mxu0 0.0
    %394 = vmatpush.msra.mxu0 0.0
    %395 = vmatpush.msra.mxu0 0.0
    %396 = vmatpush.msra.mxu0 0.0
    %397 = vmatpush.msra.mxu0 0.0
    %398 = vmatpush.msra.mxu0 0.0
    %399 = vmatpush.msra.mxu0 %v379
    %400 = vmatmul.f32.gmra.mxu0 %v382
    %v401 = vpop.f32.mrf.mxu0
    %v402 = vadd.f32 0.0, %v401
    %403 = vdwg.mxu0
    %406 = vrot.lane.b32.xlu0 %v376, 16
    %v407 = vpop.permute.xlu0 %406
    %408 = vrot.lane.b32.xlu0 %v402, 16
    %v409 = vpop.permute.xlu0 %408
    %v412 = vsel %vm133, %v242, %v407
    %v413 = vsel %vm133, %v268, %v409
    %v414 = vperm.slane %v93, 0
    %419 = vrot.lane.b32.xlu0 %v88, 32
    %v420 = vpop.permute.xlu0 %419
    %421 = vrot.lane.b32.xlu0 %v89, 32
    %v422 = vpop.permute.xlu0 %421
    %423 = vrot.lane.b32.xlu0 %v90, 32
    %v424 = vpop.permute.xlu0 %423
    %425 = vrot.lane.b32.xlu0 %v91, 32
    %v426 = vpop.permute.xlu0 %425
    %v432 = vsel %vm28, %v412, 0
    %v435 = vsel %vm28, %v413, 0
    %437 = vmatpush.msra.mxu0 0.0
    %438 = vmatpush.msra.mxu0 0.0
    %439 = vmatpush.msra.mxu0 0.0
    %440 = vmatpush.msra.mxu0 0.0
    %441 = vmatpush.msra.mxu0 0.0
    %442 = vmatpush.msra.mxu0 0.0
    %443 = vmatpush.msra.mxu0 0.0
    %444 = vmatpush.msra.mxu0 0.0
    %445 = vmatpush.msra.mxu0 0.0
    %446 = vmatpush.msra.mxu0 0.0
    %447 = vmatpush.msra.mxu0 0.0
    %448 = vmatpush.msra.mxu0 0.0
    %449 = vmatpush.msra.mxu0 %v426
    %450 = vmatpush.msra.mxu0 %v424
    %451 = vmatpush.msra.mxu0 %v422
    %452 = vmatpush.msra.mxu0 %v420
    %453 = vmatmul.f32.gmra.mxu0 %v432
    %v454 = vpop.f32.mrf.mxu0
    %v455 = vadd.f32 %v414, %v454
    %456 = vmatmul.f32.gmra.mxu0 %v435
    %v457 = vpop.f32.mrf.mxu0
    %v458 = vadd.f32 %v414, %v457
    %459 = vdwg.mxu0
    %v460 = vadd.f32 %v84, %v455
    %v461 = vadd.f32 %v85, %v458
    %v462 = vsel %vm28, %v460, 0.0
    %463 = vadd.xlane.f32.xlu0 %v462
    %v464 = vpop.xlane.xlu0 %463
    %v465 = vsel %vm28, %v461, 0.0
    %466 = vadd.xlane.f32.xlu0 %v465
    %v467 = vpop.xlane.xlu0 %466
    %v468 = vmul.f32 %v464, %v41
    %v469 = vmul.f32 %v467, %v41
    %v470 = vsub.f32 %v460, %v468
    %v471 = vsub.f32 %v461, %v469
    %v472 = vmul.f32 %v470, %v470
    %v473 = vmul.f32 %v471, %v471
    %v474 = vsel %vm28, %v472, 0.0
    %475 = vadd.xlane.f32.xlu0 %v474
    %v476 = vpop.xlane.xlu0 %475
    %v477 = vsel %vm28, %v473, 0.0
    %478 = vadd.xlane.f32.xlu0 %v477
    %v479 = vpop.xlane.xlu0 %478
    %v480 = vmul.f32 %v476, %v41
    %v481 = vmul.f32 %v479, %v41
    %v482 = vadd.f32 %v480, 1e-12
    %v483 = vadd.f32 %v481, 1e-12
    %v484 = vrsqrt.pop %v482
    %v485 = vmul.f32 %v484, %v482
    %v486 = vmul.f32 %v485, %v484
    %v487 = vmul.f32 0.5, %v486
    %v488 = vsub.f32 1.5, %v487
    %v489 = vmul.f32 %v484, %v488
    %vm490 = vweird.f32 %v482
    %vm491 = vweird.f32 %v484
    %vm492 = vmor %vm490, %vm491
    %v493 = vsel %vm492, %v484, %v489
    %v494 = vrsqrt.pop %v483
    %v495 = vmul.f32 %v494, %v483
    %v496 = vmul.f32 %v495, %v494
    %v497 = vmul.f32 0.5, %v496
    %v498 = vsub.f32 1.5, %v497
    %v499 = vmul.f32 %v494, %v498
    %vm500 = vweird.f32 %v483
    %vm501 = vweird.f32 %v494
    %vm502 = vmor %vm500, %vm501
    %v503 = vsel %vm502, %v494, %v499
    %v504 = vmul.f32 %v470, %v493
    %v505 = vmul.f32 %v471, %v503
    %v506 = vperm.slane %v94, 0
    %v507 = vmul.f32 %v504, %v506
    %v508 = vmul.f32 %v505, %v506
    %v509 = vperm.slane %v95, 0
    %v510 = vadd.f32 %v507, %v509
    %v511 = vadd.f32 %v508, %v509
    %v512 = vld [vmem:[%s3] sm:$0xff]
    %v513 = vld [vmem:[%s3 + $0x8] sm:$0xff]
    %v514 = vld [vmem:[%s3 + $0x10] sm:$0xff]
    %v515 = vld [vmem:[%s3 + $0x18] sm:$0xff]
    %v516 = vperm.slane %v96, 0
    %v518 = vsel %vm28, %v510, 0
    %v521 = vsel %vm28, %v511, 0
    %523 = vmatpush.msra.mxu0 0.0
    %524 = vmatpush.msra.mxu0 0.0
    %525 = vmatpush.msra.mxu0 0.0
    %526 = vmatpush.msra.mxu0 0.0
    %527 = vmatpush.msra.mxu0 0.0
    %528 = vmatpush.msra.mxu0 0.0
    %529 = vmatpush.msra.mxu0 0.0
    %530 = vmatpush.msra.mxu0 0.0
    %531 = vmatpush.msra.mxu0 0.0
    %532 = vmatpush.msra.mxu0 0.0
    %533 = vmatpush.msra.mxu0 0.0
    %534 = vmatpush.msra.mxu0 0.0
    %535 = vmatpush.msra.mxu0 %v515
    %536 = vmatpush.msra.mxu0 %v514
    %537 = vmatpush.msra.mxu0 %v513
    %538 = vmatpush.msra.mxu0 %v512
    %539 = vmatmul.f32.gmra.mxu0 %v518
    %v540 = vpop.f32.mrf.mxu0
    %v541 = vadd.f32 %v516, %v540
    %542 = vmatmul.f32.gmra.mxu0 %v521
    %v543 = vpop.f32.mrf.mxu0
    %v544 = vadd.f32 %v516, %v543
    %545 = vdwg.mxu0
    %v546 = vmul.f32 %v541, %v541
    %v547 = vmul.f32 %v544, %v544
    %v548 = vmul.f32 %v541, %v546
    %v549 = vmul.f32 %v544, %v547
    %v550 = vmul.f32 %v548, 0.044715
    %v551 = vmul.f32 %v549, 0.044715
    %v552 = vadd.f32 %v541, %v550
    %v553 = vadd.f32 %v544, %v551
    %v554 = vmul.f32 %v552, 0.7978846
    %v555 = vmul.f32 %v553, 0.7978846
    %v556 = vtanh.pop %v554
    %v557 = vtanh.pop %v555
    %v558 = vadd.f32 %v556, 1.0
    %v559 = vadd.f32 %v557, 1.0
    %v560 = vmul.f32 %v558, 0.5
    %v561 = vmul.f32 %v559, 0.5
    %v562 = vmul.f32 %v541, %v560
    %v563 = vmul.f32 %v544, %v561
    %v564 = vld [vmem:[%s4] sm:$0xff]
    %v565 = vld [vmem:[%s4 + $0x8] sm:$0xff]
    %v566 = vld [vmem:[%s4 + $0x10] sm:$0xff]
    %v567 = vld [vmem:[%s4 + $0x18] sm:$0xff]
    %v568 = vld [vmem:[%s4 + $0x20] sm:$0xff]
    %v569 = vld [vmem:[%s4 + $0x28] sm:$0xff]
    %v570 = vld [vmem:[%s4 + $0x30] sm:$0xff]
    %v571 = vld [vmem:[%s4 + $0x38] sm:$0xff]
    %v572 = vperm.slane %v97, 0
    %vm573 = vcmask 523264
    %v575 = vsel %vm573, %v562, 0
    %v578 = vsel %vm573, %v563, 0
    %580 = vmatpush.msra.mxu0 0.0
    %581 = vmatpush.msra.mxu0 0.0
    %582 = vmatpush.msra.mxu0 0.0
    %583 = vmatpush.msra.mxu0 0.0
    %584 = vmatpush.msra.mxu0 0.0
    %585 = vmatpush.msra.mxu0 0.0
    %586 = vmatpush.msra.mxu0 0.0
    %587 = vmatpush.msra.mxu0 0.0
    %588 = vmatpush.msra.mxu0 %v571
    %589 = vmatpush.msra.mxu0 %v570
    %590 = vmatpush.msra.mxu0 %v569
    %591 = vmatpush.msra.mxu0 %v568
    %592 = vmatpush.msra.mxu0 %v567
    %593 = vmatpush.msra.mxu0 %v566
    %594 = vmatpush.msra.mxu0 %v565
    %595 = vmatpush.msra.mxu0 %v564
    %596 = vmatmul.f32.gmra.mxu0 %v575
    %v597 = vpop.f32.mrf.mxu0
    %v598 = vadd.f32 %v572, %v597
    %599 = vmatmul.f32.gmra.mxu0 %v578
    %v600 = vpop.f32.mrf.mxu0
    %v601 = vadd.f32 %v572, %v600
    %602 = vdwg.mxu0
    %v603 = vadd.f32 %v510, %v598
    %v604 = vadd.f32 %v511, %v601
    %v605 = vsel %vm28, %v603, 0.0
    %606 = vadd.xlane.f32.xlu0 %v605
    %v607 = vpop.xlane.xlu0 %606
    %v608 = vsel %vm28, %v604, 0.0
    %609 = vadd.xlane.f32.xlu0 %v608
    %v610 = vpop.xlane.xlu0 %609
    %v611 = vmul.f32 %v607, %v41
    %v612 = vmul.f32 %v610, %v41
    %v613 = vsub.f32 %v603, %v611
    %v614 = vsub.f32 %v604, %v612
    %v615 = vmul.f32 %v613, %v613
    %v616 = vmul.f32 %v614, %v614
    %v617 = vsel %vm28, %v615, 0.0
    %618 = vadd.xlane.f32.xlu0 %v617
    %v619 = vpop.xlane.xlu0 %618
    %v620 = vsel %vm28, %v616, 0.0
    %621 = vadd.xlane.f32.xlu0 %v620
    %v622 = vpop.xlane.xlu0 %621
    %v623 = vmul.f32 %v619, %v41
    %v624 = vmul.f32 %v622, %v41
    %v625 = vadd.f32 %v623, 1e-12
    %v626 = vadd.f32 %v624, 1e-12
    %v627 = vrsqrt.pop %v625
    %v628 = vmul.f32 %v627, %v625
    %v629 = vmul.f32 %v628, %v627
    %v630 = vmul.f32 0.5, %v629
    %v631 = vsub.f32 1.5, %v630
    %v632 = vmul.f32 %v627, %v631
    %vm633 = vweird.f32 %v625
    %vm634 = vweird.f32 %v627
    %vm635 = vmor %vm633, %vm634
    %v636 = vsel %vm635, %v627, %v632
    %v637 = vrsqrt.pop %v626
    %v638 = vmul.f32 %v637, %v626
    %v639 = vmul.f32 %v638, %v637
    %v640 = vmul.f32 0.5, %v639
    %v641 = vsub.f32 1.5, %v640
    %v642 = vmul.f32 %v637, %v641
    %vm643 = vweird.f32 %v626
    %vm644 = vweird.f32 %v637
    %vm645 = vmor %vm643, %vm644
    %v646 = vsel %vm645, %v637, %v642
    %v647 = vmul.f32 %v613, %v636
    %v648 = vmul.f32 %v614, %v646
    %v649 = vperm.slane %v98, 0
    %v650 = vmul.f32 %v647, %v649
    %v651 = vmul.f32 %v648, %v649
    %v652 = vperm.slane %v99, 0
    %v653 = vadd.f32 %v650, %v652
    %v654 = vadd.f32 %v651, %v652
    %s655 = scalar_lea.vmem %s2, 32
    %v656 = vld [vmem:[%s655] sm:$0xff]
    %v657 = vld [vmem:[%s655 + $0x8] sm:$0xff]
    %v658 = vld [vmem:[%s655 + $0x10] sm:$0xff]
    %v659 = vld [vmem:[%s655 + $0x18] sm:$0xff]
    %v660 = vld [vmem:[%s5 + $0xa] sm:$0x1]
    %v661 = vld [vmem:[%s5 + $0xb] sm:$0x1]
    %v662 = vld [vmem:[%s5 + $0xc] sm:$0x1]
    %v663 = vld [vmem:[%s5 + $0xd] sm:$0x1]
    %v664 = vld [vmem:[%s5 + $0xe] sm:$0x1]
    %v665 = vld [vmem:[%s5 + $0xf] sm:$0x1]
    %v666 = vld [vmem:[%s5 + $0x10] sm:$0x1]
    %v667 = vld [vmem:[%s5 + $0x11] sm:$0x1]
    %v668 = vperm.slane %v660, 0
    %v670 = vsel %vm28, %v653, 0
    %v673 = vsel %vm28, %v654, 0
    %675 = vmatpush.msra.mxu0 0.0
    %676 = vmatpush.msra.mxu0 0.0
    %677 = vmatpush.msra.mxu0 0.0
    %678 = vmatpush.msra.mxu0 0.0
    %679 = vmatpush.msra.mxu0 0.0
    %680 = vmatpush.msra.mxu0 0.0
    %681 = vmatpush.msra.mxu0 0.0
    %682 = vmatpush.msra.mxu0 0.0
    %683 = vmatpush.msra.mxu0 0.0
    %684 = vmatpush.msra.mxu0 0.0
    %685 = vmatpush.msra.mxu0 0.0
    %686 = vmatpush.msra.mxu0 0.0
    %687 = vmatpush.msra.mxu0 %v659
    %688 = vmatpush.msra.mxu0 %v658
    %689 = vmatpush.msra.mxu0 %v657
    %690 = vmatpush.msra.mxu0 %v656
    %691 = vmatmul.f32.gmra.mxu0 %v670
    %v692 = vpop.f32.mrf.mxu0
    %v693 = vadd.f32 %v668, %v692
    %694 = vmatmul.f32.gmra.mxu0 %v673
    %v695 = vpop.f32.mrf.mxu0
    %v696 = vadd.f32 %v668, %v695
    %697 = vdwg.mxu0
    %699 = vrot.lane.b32.xlu0 %v693, 96
    %v700 = vpop.permute.xlu0 %699
    %v701 = vsel %vm133, %v693, 0
    %v703 = vsel %vm133, %v700, 0
    %705 = vmatpush.xpose.msra.mxu0 0.0
    %706 = vmatpush.xpose.msra.mxu0 0.0
    %707 = vmatpush.xpose.msra.mxu0 0.0
    %708 = vmatpush.xpose.msra.mxu0 0.0
    %709 = vmatpush.xpose.msra.mxu0 0.0
    %710 = vmatpush.xpose.msra.mxu0 0.0
    %711 = vmatpush.xpose.msra.mxu0 0.0
    %712 = vmatpush.xpose.msra.mxu0 0.0
    %713 = vmatpush.xpose.msra.mxu0 0.0
    %714 = vmatpush.xpose.msra.mxu0 0.0
    %715 = vmatpush.xpose.msra.mxu0 0.0
    %716 = vmatpush.xpose.msra.mxu0 0.0
    %717 = vmatpush.xpose.msra.mxu0 0.0
    %718 = vmatpush.xpose.msra.mxu0 0.0
    %719 = vmatpush.xpose.msra.mxu0 0.0
    %720 = vmatpush.xpose.msra.mxu0 %v703
    %721 = vmatmul.f32.gmra.mxu0 %v701
    %v722 = vpop.f32.mrf.mxu0
    %v723 = vadd.f32 0.0, %v722
    %724 = vdwg.mxu0
    %726 = vrot.lane.b32.xlu0 %v696, 96
    %v727 = vpop.permute.xlu0 %726
    %v728 = vsel %vm133, %v696, 0
    %v730 = vsel %vm133, %v727, 0
    %732 = vmatpush.xpose.msra.mxu0 0.0
    %733 = vmatpush.xpose.msra.mxu0 0.0
    %734 = vmatpush.xpose.msra.mxu0 0.0
    %735 = vmatpush.xpose.msra.mxu0 0.0
    %736 = vmatpush.xpose.msra.mxu0 0.0
    %737 = vmatpush.xpose.msra.mxu0 0.0
    %738 = vmatpush.xpose.msra.mxu0 0.0
    %739 = vmatpush.xpose.msra.mxu0 0.0
    %740 = vmatpush.xpose.msra.mxu0 0.0
    %741 = vmatpush.xpose.msra.mxu0 0.0
    %742 = vmatpush.xpose.msra.mxu0 0.0
    %743 = vmatpush.xpose.msra.mxu0 0.0
    %744 = vmatpush.xpose.msra.mxu0 0.0
    %745 = vmatpush.xpose.msra.mxu0 0.0
    %746 = vmatpush.xpose.msra.mxu0 0.0
    %747 = vmatpush.xpose.msra.mxu0 %v730
    %748 = vmatmul.f32.gmra.mxu0 %v728
    %v749 = vpop.f32.mrf.mxu0
    %v750 = vadd.f32 0.0, %v749
    %751 = vdwg.mxu0
    %v752 = vmul.f32 %v723, 0.25
    %v753 = vmul.f32 %v750, 0.25
    %v754 = vadd.f32 %v752, %v189
    %v755 = vadd.f32 %v753, %v190
    %v756 = vsel %vm195, %v754, -inf
    %757 = vmax.xlane.f32.xlu0 %v756
    %v758 = vpop.xlane.xlu0 %757
    %v759 = vsel %vm195, %v755, -inf
    %760 = vmax.xlane.f32.xlu0 %v759
    %v761 = vpop.xlane.xlu0 %760
    %v762 = vsub.f32 %v754, %v758
    %v763 = vsub.f32 %v755, %v761
    %v764 = vmul.f32 %v762, 1.442695
    %v765 = vpow.pop %v764
    %v766 = vmul.f32 %v763, 1.442695
    %v767 = vpow.pop %v766
    %v768 = vsel %vm195, %v765, 0.0
    %769 = vadd.xlane.f32.xlu0 %v768
    %v770 = vpop.xlane.xlu0 %769
    %v771 = vsel %vm195, %v767, 0.0
    %772 = vadd.xlane.f32.xlu0 %v771
    %v773 = vpop.xlane.xlu0 %772
    %v774 = vrcp.pop %v770
    %v775 = vrcp.pop %v773
    %v776 = vmul.f32 %v765, %v774
    %v777 = vmul.f32 %v767, %v775
    %778 = vrot.lane.b32.xlu0 %v693, 64
    %v779 = vpop.permute.xlu0 %778
    %v782 = vsel %vm195, %v776, 0
    %784 = vmatpush.msra.mxu0 0.0
    %785 = vmatpush.msra.mxu0 0.0
    %786 = vmatpush.msra.mxu0 0.0
    %787 = vmatpush.msra.mxu0 0.0
    %788 = vmatpush.msra.mxu0 0.0
    %789 = vmatpush.msra.mxu0 0.0
    %790 = vmatpush.msra.mxu0 0.0
    %791 = vmatpush.msra.mxu0 0.0
    %792 = vmatpush.msra.mxu0 0.0
    %793 = vmatpush.msra.mxu0 0.0
    %794 = vmatpush.msra.mxu0 0.0
    %795 = vmatpush.msra.mxu0 0.0
    %796 = vmatpush.msra.mxu0 0.0
    %797 = vmatpush.msra.mxu0 0.0
    %798 = vmatpush.msra.mxu0 0.0
    %799 = vmatpush.msra.mxu0 %v779
    %800 = vmatmul.f32.gmra.mxu0 %v782
    %v801 = vpop.f32.mrf.mxu0
    %v802 = vadd.f32 0.0, %v801
    %803 = vdwg.mxu0
    %804 = vrot.lane.b32.xlu0 %v696, 64
    %v805 = vpop.permute.xlu0 %804
    %v808 = vsel %vm195, %v777, 0
    %810 = vmatpush.msra.mxu0 0.0
    %811 = vmatpush.msra.mxu0 0.0
    %812 = vmatpush.msra.mxu0 0.0
    %813 = vmatpush.msra.mxu0 0.0
    %814 = vmatpush.msra.mxu0 0.0
    %815 = vmatpush.msra.mxu0 0.0
    %816 = vmatpush.msra.mxu0 0.0
    %817 = vmatpush.msra.mxu0 0.0
    %818 = vmatpush.msra.mxu0 0.0
    %819 = vmatpush.msra.mxu0 0.0
    %820 = vmatpush.msra.mxu0 0.0
    %821 = vmatpush.msra.mxu0 0.0
    %822 = vmatpush.msra.mxu0 0.0
    %823 = vmatpush.msra.mxu0 0.0
    %824 = vmatpush.msra.mxu0 0.0
    %825 = vmatpush.msra.mxu0 %v805
    %826 = vmatmul.f32.gmra.mxu0 %v808
    %v827 = vpop.f32.mrf.mxu0
    %v828 = vadd.f32 0.0, %v827
    %829 = vdwg.mxu0
    %830 = vrot.lane.b32.xlu0 %v693, 112
    %v831 = vpop.permute.xlu0 %830
    %832 = vrot.lane.b32.xlu0 %v693, 80
    %v833 = vpop.permute.xlu0 %832
    %v834 = vsel %vm133, %v831, 0
    %v836 = vsel %vm133, %v833, 0
    %838 = vmatpush.xpose.msra.mxu0 0.0
    %839 = vmatpush.xpose.msra.mxu0 0.0
    %840 = vmatpush.xpose.msra.mxu0 0.0
    %841 = vmatpush.xpose.msra.mxu0 0.0
    %842 = vmatpush.xpose.msra.mxu0 0.0
    %843 = vmatpush.xpose.msra.mxu0 0.0
    %844 = vmatpush.xpose.msra.mxu0 0.0
    %845 = vmatpush.xpose.msra.mxu0 0.0
    %846 = vmatpush.xpose.msra.mxu0 0.0
    %847 = vmatpush.xpose.msra.mxu0 0.0
    %848 = vmatpush.xpose.msra.mxu0 0.0
    %849 = vmatpush.xpose.msra.mxu0 0.0
    %850 = vmatpush.xpose.msra.mxu0 0.0
    %851 = vmatpush.xpose.msra.mxu0 0.0
    %852 = vmatpush.xpose.msra.mxu0 0.0
    %853 = vmatpush.xpose.msra.mxu0 %v836
    %854 = vmatmul.f32.gmra.mxu0 %v834
    %v855 = vpop.f32.mrf.mxu0
    %v856 = vadd.f32 0.0, %v855
    %857 = vdwg.mxu0
    %858 = vrot.lane.b32.xlu0 %v696, 112
    %v859 = vpop.permute.xlu0 %858
    %860 = vrot.lane.b32.xlu0 %v696, 80
    %v861 = vpop.permute.xlu0 %860
    %v862 = vsel %vm133, %v859, 0
    %v864 = vsel %vm133, %v861, 0
    %866 = vmatpush.xpose.msra.mxu0 0.0
    %867 = vmatpush.xpose.msra.mxu0 0.0
    %868 = vmatpush.xpose.msra.mxu0 0.0
    %869 = vmatpush.xpose.msra.mxu0 0.0
    %870 = vmatpush.xpose.msra.mxu0 0.0
    %871 = vmatpush.xpose.msra.mxu0 0.0
    %872 = vmatpush.xpose.msra.mxu0 0.0
    %873 = vmatpush.xpose.msra.mxu0 0.0
    %874 = vmatpush.xpose.msra.mxu0 0.0
    %875 = vmatpush.xpose.msra.mxu0 0.0
    %876 = vmatpush.xpose.msra.mxu0 0.0
    %877 = vmatpush.xpose.msra.mxu0 0.0
    %878 = vmatpush.xpose.msra.mxu0 0.0
    %879 = vmatpush.xpose.msra.mxu0 0.0
    %880 = vmatpush.xpose.msra.mxu0 0.0
    %881 = vmatpush.xpose.msra.mxu0 %v864
    %882 = vmatmul.f32.gmra.mxu0 %v862
    %v883 = vpop.f32.mrf.mxu0
    %v884 = vadd.f32 0.0, %v883
    %885 = vdwg.mxu0
    %v886 = vmul.f32 %v856, 0.25
    %v887 = vmul.f32 %v884, 0.25
    %v888 = vadd.f32 %v886, %v189
    %v889 = vadd.f32 %v887, %v190
    %v890 = vsel %vm195, %v888, -inf
    %891 = vmax.xlane.f32.xlu0 %v890
    %v892 = vpop.xlane.xlu0 %891
    %v893 = vsel %vm195, %v889, -inf
    %894 = vmax.xlane.f32.xlu0 %v893
    %v895 = vpop.xlane.xlu0 %894
    %v896 = vsub.f32 %v888, %v892
    %v897 = vsub.f32 %v889, %v895
    %v898 = vmul.f32 %v896, 1.442695
    %v899 = vpow.pop %v898
    %v900 = vmul.f32 %v897, 1.442695
    %v901 = vpow.pop %v900
    %v902 = vsel %vm195, %v899, 0.0
    %903 = vadd.xlane.f32.xlu0 %v902
    %v904 = vpop.xlane.xlu0 %903
    %v905 = vsel %vm195, %v901, 0.0
    %906 = vadd.xlane.f32.xlu0 %v905
    %v907 = vpop.xlane.xlu0 %906
    %v908 = vrcp.pop %v904
    %v909 = vrcp.pop %v907
    %v910 = vmul.f32 %v899, %v908
    %v911 = vmul.f32 %v901, %v909
    %912 = vrot.lane.b32.xlu0 %v693, 48
    %v913 = vpop.permute.xlu0 %912
    %v916 = vsel %vm195, %v910, 0
    %918 = vmatpush.msra.mxu0 0.0
    %919 = vmatpush.msra.mxu0 0.0
    %920 = vmatpush.msra.mxu0 0.0
    %921 = vmatpush.msra.mxu0 0.0
    %922 = vmatpush.msra.mxu0 0.0
    %923 = vmatpush.msra.mxu0 0.0
    %924 = vmatpush.msra.mxu0 0.0
    %925 = vmatpush.msra.mxu0 0.0
    %926 = vmatpush.msra.mxu0 0.0
    %927 = vmatpush.msra.mxu0 0.0
    %928 = vmatpush.msra.mxu0 0.0
    %929 = vmatpush.msra.mxu0 0.0
    %930 = vmatpush.msra.mxu0 0.0
    %931 = vmatpush.msra.mxu0 0.0
    %932 = vmatpush.msra.mxu0 0.0
    %933 = vmatpush.msra.mxu0 %v913
    %934 = vmatmul.f32.gmra.mxu0 %v916
    %v935 = vpop.f32.mrf.mxu0
    %v936 = vadd.f32 0.0, %v935
    %937 = vdwg.mxu0
    %938 = vrot.lane.b32.xlu0 %v696, 48
    %v939 = vpop.permute.xlu0 %938
    %v942 = vsel %vm195, %v911, 0
    %944 = vmatpush.msra.mxu0 0.0
    %945 = vmatpush.msra.mxu0 0.0
    %946 = vmatpush.msra.mxu0 0.0
    %947 = vmatpush.msra.mxu0 0.0
    %948 = vmatpush.msra.mxu0 0.0
    %949 = vmatpush.msra.mxu0 0.0
    %950 = vmatpush.msra.mxu0 0.0
    %951 = vmatpush.msra.mxu0 0.0
    %952 = vmatpush.msra.mxu0 0.0
    %953 = vmatpush.msra.mxu0 0.0
    %954 = vmatpush.msra.mxu0 0.0
    %955 = vmatpush.msra.mxu0 0.0
    %956 = vmatpush.msra.mxu0 0.0
    %957 = vmatpush.msra.mxu0 0.0
    %958 = vmatpush.msra.mxu0 0.0
    %959 = vmatpush.msra.mxu0 %v939
    %960 = vmatmul.f32.gmra.mxu0 %v942
    %v961 = vpop.f32.mrf.mxu0
    %v962 = vadd.f32 0.0, %v961
    %963 = vdwg.mxu0
    %966 = vrot.lane.b32.xlu0 %v936, 16
    %v967 = vpop.permute.xlu0 %966
    %968 = vrot.lane.b32.xlu0 %v962, 16
    %v969 = vpop.permute.xlu0 %968
    %v972 = vsel %vm133, %v802, %v967
    %v973 = vsel %vm133, %v828, %v969
    %v974 = vperm.slane %v661, 0
    %979 = vrot.lane.b32.xlu0 %v656, 32
    %v980 = vpop.permute.xlu0 %979
    %981 = vrot.lane.b32.xlu0 %v657, 32
    %v982 = vpop.permute.xlu0 %981
    %983 = vrot.lane.b32.xlu0 %v658, 32
    %v984 = vpop.permute.xlu0 %983
    %985 = vrot.lane.b32.xlu0 %v659, 32
    %v986 = vpop.permute.xlu0 %985
    %v992 = vsel %vm28, %v972, 0
    %v995 = vsel %vm28, %v973, 0
    %997 = vmatpush.msra.mxu0 0.0
    %998 = vmatpush.msra.mxu0 0.0
    %999 = vmatpush.msra.mxu0 0.0
    %1000 = vmatpush.msra.mxu0 0.0
    %1001 = vmatpush.msra.mxu0 0.0
    %1002 = vmatpush.msra.mxu0 0.0
    %1003 = vmatpush.msra.mxu0 0.0
    %1004 = vmatpush.msra.mxu0 0.0
    %1005 = vmatpush.msra.mxu0 0.0
    %1006 = vmatpush.msra.mxu0 0.0
    %1007 = vmatpush.msra.mxu0 0.0
    %1008 = vmatpush.msra.mxu0 0.0
    %1009 = vmatpush.msra.mxu0 %v986
    %1010 = vmatpush.msra.mxu0 %v984
    %1011 = vmatpush.msra.mxu0 %v982
    %1012 = vmatpush.msra.mxu0 %v980
    %1013 = vmatmul.f32.gmra.mxu0 %v992
    %v1014 = vpop.f32.mrf.mxu0
    %v1015 = vadd.f32 %v974, %v1014
    %1016 = vmatmul.f32.gmra.mxu0 %v995
    %v1017 = vpop.f32.mrf.mxu0
    %v1018 = vadd.f32 %v974, %v1017
    %1019 = vdwg.mxu0
    %v1020 = vadd.f32 %v653, %v1015
    %v1021 = vadd.f32 %v654, %v1018
    %v1022 = vsel %vm28, %v1020, 0.0
    %1023 = vadd.xlane.f32.xlu0 %v1022
    %v1024 = vpop.xlane.xlu0 %1023
    %v1025 = vsel %vm28, %v1021, 0.0
    %1026 = vadd.xlane.f32.xlu0 %v1025
    %v1027 = vpop.xlane.xlu0 %1026
    %v1028 = vmul.f32 %v1024, %v41
    %v1029 = vmul.f32 %v1027, %v41
    %v1030 = vsub.f32 %v1020, %v1028
    %v1031 = vsub.f32 %v1021, %v1029
    %v1032 = vmul.f32 %v1030, %v1030
    %v1033 = vmul.f32 %v1031, %v1031
    %v1034 = vsel %vm28, %v1032, 0.0
    %1035 = vadd.xlane.f32.xlu0 %v1034
    %v1036 = vpop.xlane.xlu0 %1035
    %v1037 = vsel %vm28, %v1033, 0.0
    %1038 = vadd.xlane.f32.xlu0 %v1037
    %v1039 = vpop.xlane.xlu0 %1038
    %v1040 = vmul.f32 %v1036, %v41
    %v1041 = vmul.f32 %v1039, %v41
    %v1042 = vadd.f32 %v1040, 1e-12
    %v1043 = vadd.f32 %v1041, 1e-12
    %v1044 = vrsqrt.pop %v1042
    %v1045 = vmul.f32 %v1044, %v1042
    %v1046 = vmul.f32 %v1045, %v1044
    %v1047 = vmul.f32 0.5, %v1046
    %v1048 = vsub.f32 1.5, %v1047
    %v1049 = vmul.f32 %v1044, %v1048
    %vm1050 = vweird.f32 %v1042
    %vm1051 = vweird.f32 %v1044
    %vm1052 = vmor %vm1050, %vm1051
    %v1053 = vsel %vm1052, %v1044, %v1049
    %v1054 = vrsqrt.pop %v1043
    %v1055 = vmul.f32 %v1054, %v1043
    %v1056 = vmul.f32 %v1055, %v1054
    %v1057 = vmul.f32 0.5, %v1056
    %v1058 = vsub.f32 1.5, %v1057
    %v1059 = vmul.f32 %v1054, %v1058
    %vm1060 = vweird.f32 %v1043
    %vm1061 = vweird.f32 %v1054
    %vm1062 = vmor %vm1060, %vm1061
    %v1063 = vsel %vm1062, %v1054, %v1059
    %v1064 = vmul.f32 %v1030, %v1053
    %v1065 = vmul.f32 %v1031, %v1063
    %v1066 = vperm.slane %v662, 0
    %v1067 = vmul.f32 %v1064, %v1066
    %v1068 = vmul.f32 %v1065, %v1066
    %v1069 = vperm.slane %v663, 0
    %v1070 = vadd.f32 %v1067, %v1069
    %v1071 = vadd.f32 %v1068, %v1069
    %s1072 = scalar_lea.vmem %s3, 32
    %v1073 = vld [vmem:[%s1072] sm:$0xff]
    %v1074 = vld [vmem:[%s1072 + $0x8] sm:$0xff]
    %v1075 = vld [vmem:[%s1072 + $0x10] sm:$0xff]
    %v1076 = vld [vmem:[%s1072 + $0x18] sm:$0xff]
    %v1077 = vperm.slane %v664, 0
    %v1079 = vsel %vm28, %v1070, 0
    %v1082 = vsel %vm28, %v1071, 0
    %1084 = vmatpush.msra.mxu0 0.0
    %1085 = vmatpush.msra.mxu0 0.0
    %1086 = vmatpush.msra.mxu0 0.0
    %1087 = vmatpush.msra.mxu0 0.0
    %1088 = vmatpush.msra.mxu0 0.0
    %1089 = vmatpush.msra.mxu0 0.0
    %1090 = vmatpush.msra.mxu0 0.0
    %1091 = vmatpush.msra.mxu0 0.0
    %1092 = vmatpush.msra.mxu0 0.0
    %1093 = vmatpush.msra.mxu0 0.0
    %1094 = vmatpush.msra.mxu0 0.0
    %1095 = vmatpush.msra.mxu0 0.0
    %1096 = vmatpush.msra.mxu0 %v1076
    %1097 = vmatpush.msra.mxu0 %v1075
    %1098 = vmatpush.msra.mxu0 %v1074
    %1099 = vmatpush.msra.mxu0 %v1073
    %1100 = vmatmul.f32.gmra.mxu0 %v1079
    %v1101 = vpop.f32.mrf.mxu0
    %v1102 = vadd.f32 %v1077, %v1101
    %1103 = vmatmul.f32.gmra.mxu0 %v1082
    %v1104 = vpop.f32.mrf.mxu0
    %v1105 = vadd.f32 %v1077, %v1104
    %1106 = vdwg.mxu0
    %v1107 = vmul.f32 %v1102, %v1102
    %v1108 = vmul.f32 %v1105, %v1105
    %v1109 = vmul.f32 %v1102, %v1107
    %v1110 = vmul.f32 %v1105, %v1108
    %v1111 = vmul.f32 %v1109, 0.044715
    %v1112 = vmul.f32 %v1110, 0.044715
    %v1113 = vadd.f32 %v1102, %v1111
    %v1114 = vadd.f32 %v1105, %v1112
    %v1115 = vmul.f32 %v1113, 0.7978846
    %v1116 = vmul.f32 %v1114, 0.7978846
    %v1117 = vtanh.pop %v1115
    %v1118 = vtanh.pop %v1116
    %v1119 = vadd.f32 %v1117, 1.0
    %v1120 = vadd.f32 %v1118, 1.0
    %v1121 = vmul.f32 %v1119, 0.5
    %v1122 = vmul.f32 %v1120, 0.5
    %v1123 = vmul.f32 %v1102, %v1121
    %v1124 = vmul.f32 %v1105, %v1122
    %s1125 = scalar_lea.vmem %s4, 64
    %v1126 = vld [vmem:[%s1125] sm:$0xff]
    %v1127 = vld [vmem:[%s1125 + $0x8] sm:$0xff]
    %v1128 = vld [vmem:[%s1125 + $0x10] sm:$0xff]
    %v1129 = vld [vmem:[%s1125 + $0x18] sm:$0xff]
    %v1130 = vld [vmem:[%s1125 + $0x20] sm:$0xff]
    %v1131 = vld [vmem:[%s1125 + $0x28] sm:$0xff]
    %v1132 = vld [vmem:[%s1125 + $0x30] sm:$0xff]
    %v1133 = vld [vmem:[%s1125 + $0x38] sm:$0xff]
    %v1134 = vperm.slane %v665, 0
    %v1136 = vsel %vm573, %v1123, 0
    %v1139 = vsel %vm573, %v1124, 0
    %1141 = vmatpush.msra.mxu0 0.0
    %1142 = vmatpush.msra.mxu0 0.0
    %1143 = vmatpush.msra.mxu0 0.0
    %1144 = vmatpush.msra.mxu0 0.0
    %1145 = vmatpush.msra.mxu0 0.0
    %1146 = vmatpush.msra.mxu0 0.0
    %1147 = vmatpush.msra.mxu0 0.0
    %1148 = vmatpush.msra.mxu0 0.0
    %1149 = vmatpush.msra.mxu0 %v1133
    %1150 = vmatpush.msra.mxu0 %v1132
    %1151 = vmatpush.msra.mxu0 %v1131
    %1152 = vmatpush.msra.mxu0 %v1130
    %1153 = vmatpush.msra.mxu0 %v1129
    %1154 = vmatpush.msra.mxu0 %v1128
    %1155 = vmatpush.msra.mxu0 %v1127
    %1156 = vmatpush.msra.mxu0 %v1126
    %1157 = vmatmul.f32.gmra.mxu0 %v1136
    %v1158 = vpop.f32.mrf.mxu0
    %v1159 = vadd.f32 %v1134, %v1158
    %1160 = vmatmul.f32.gmra.mxu0 %v1139
    %v1161 = vpop.f32.mrf.mxu0
    %v1162 = vadd.f32 %v1134, %v1161
    %1163 = vdwg.mxu0
    %v1164 = vadd.f32 %v1070, %v1159
    %v1165 = vadd.f32 %v1071, %v1162
    %v1167 = vrot.slane %v1165, 7
    %vm1169 = vcmask 1040384
    %v1170 = vsel %vm1169, %v1164, %v1167
    %vm1171 = vcmask 254976
    %v1172 = vsel %vm1171, %v1170, 0.0
    %1173 = vadd.xlane.f32.xlu0 %v1172
    %v1174 = vpop.xlane.xlu0 %1173
    %v1175 = vmul.f32 %v1174, %v41
    %v1176 = vsub.f32 %v1170, %v1175
    %v1177 = vmul.f32 %v1176, %v1176
    %v1178 = vsel %vm1171, %v1177, 0.0
    %1179 = vadd.xlane.f32.xlu0 %v1178
    %v1180 = vpop.xlane.xlu0 %1179
    %v1181 = vmul.f32 %v1180, %v41
    %v1182 = vadd.f32 %v1181, 1e-12
    %v1183 = vrsqrt.pop %v1182
    %v1184 = vmul.f32 %v1183, %v1182
    %v1185 = vmul.f32 %v1184, %v1183
    %v1186 = vmul.f32 0.5, %v1185
    %v1187 = vsub.f32 1.5, %v1186
    %v1188 = vmul.f32 %v1183, %v1187
    %vm1189 = vweird.f32 %v1182
    %vm1190 = vweird.f32 %v1183
    %vm1191 = vmor %vm1189, %vm1190
    %v1192 = vsel %vm1191, %v1183, %v1188
    %v1193 = vmul.f32 %v1176, %v1192
    %v1194 = vperm.slane %v666, 0
    %v1195 = vmul.f32 %v1193, %v1194
    %v1196 = vperm.slane %v667, 0
    %v1197 = vadd.f32 %v1195, %v1196
    %1198 = vst.msk [vmem:[#allocation2] sm:$0x3] %vm1171, %v1197
    // Predicated region
    $region26: #{transformer_forward.1} parent=1 // pred_check
      _
    $region27: #{transformer_forward.1} parent=1 // pred_check_branch
      %1200 = sbr.rel (0) target = $region29
    $region28: #{transformer_forward.1} parent=1 // pred_region
      %1202 = vsyncadd [#allocation3], 0
      %s1204 = sshll.u32 [#allocation2], 4
      %s1205 = int_to_ptr.vmem [resolvable:$true] %s1204
      %s1206 = sshll.u32 %s6, 4
      %s1207 = int_to_ptr.hbm [resolvable:$true] %s1206
      %1209 = dma.vmem_to_hbm [thread:$0]  %s1205, 32, %s1207, [#allocation3]
    $region29: #{transformer_forward.1} parent=1 // pred_fallthru
      _
    // Predicated region
    $region30: #{transformer_forward.1} parent=1 // pred_check
      _
    $region31: #{transformer_forward.1} parent=1 // pred_check_branch
      %1211 = sbr.rel (0) target = $region33
    $region32: #{transformer_forward.1} parent=1 // pred_region
      %1213 = dma.done [#allocation3], 32
    $region33: #{transformer_forward.1} parent=1 // pred_fallthru
      _
    %1214 = vsyncpa [#allocation3], 1

</llo_original>
